<compile_context>
chip_gen: v6e
topology: v6e:2x2x1
jax: 0.10.0
libtpu: 0.0.40
codegen_flags: <defaults>
</compile_context>

<pallas_src>
import functools

import jax
import jax.numpy as jnp
from jax.experimental import pallas as pl
from jax.experimental.pallas import tpu as pltpu


_VMEM = pl.BlockSpec(memory_space=pltpu.MemorySpace.VMEM)
_SMEM = pl.BlockSpec(memory_space=pltpu.MemorySpace.SMEM)


# ----------------------------- fused Pallas kernel ----------------------------- #

def _seq2seq_kernel(src_ref, trg_ref,              # SMEM int32 [src_len, B], [trg_len, B]
                    enc_tab_ref, dec_tab_ref,      # VMEM f32 [vocab, 4H] (pre-projected)
                    enc_whh_ref, dec_whh_ref,      # VMEM f32 [H, 4H]   (g cols pre-scaled x2)
                    fc_w_ref, fc_b_ref,            # VMEM f32 [H, Vp], [1, Vp]
                    out_ref,                       # VMEM f32 [trg_len, b_pad, Vp]
                    hs_ref,                        # VMEM scratch [n_dec*b_pad, H]
                    *, src_len, trg_len, batch, b_pad, hid, v_pad):
    f32 = jnp.float32
    n_dec = trg_len - 2
    four_h = 4 * hid

    def gather_xg(tab_ref, idx_ref, t):
        # Per-row dynamic gather of the pre-projected gate inputs (x@W_ih + b, g cols x2).
        rows = [tab_ref[pl.ds(idx_ref[t, b], 1), :] for b in range(batch)]
        if b_pad > batch:
            rows.append(jnp.zeros((b_pad - batch, four_h), f32))   # pad rows are discarded
        return jnp.concatenate(rows, axis=0)                       # [b_pad, 4H]

    def cell(xg, h, c, whh):
        # One MXU matmul per recurrent step; ONE whole-vreg sigmoid (the g-gate columns are
        # pre-scaled by 2, so tanh(a) == 2*sigmoid(2a) - 1).  Only tanh(c_new) stays.
        gates = xg + jnp.dot(h, whh, preferred_element_type=f32)   # [b_pad, 4H = 128 lanes]
        sg = jax.nn.sigmoid(gates)                                 # single EUP pass
        # NOTE: 32-lane gate slices at offsets 32/64/96 may need XLU lane shifts; acceptable
        # at 14 steps (checked as a known, small cost — see review item on lane alignment).
        i_g = sg[:, 0 * hid:1 * hid]
        f_g = sg[:, 1 * hid:2 * hid]
        g_g = 2.0 * sg[:, 2 * hid:3 * hid] - 1.0                   # == tanh(pre-activation)
        o_g = sg[:, 3 * hid:4 * hid]
        c_new = f_g * c + i_g * g_g
        h_new = o_g * jnp.tanh(c_new)                              # small [b_pad, H] tanh
        return h_new, c_new

    h = jnp.zeros((b_pad, hid), f32)
    c = jnp.zeros((b_pad, hid), f32)

    # (1) encoder recurrence — h/c stay in vregs, static unroll, tiny trip count.
    enc_whh = enc_whh_ref[...]
    for t in range(src_len):
        h, c = cell(gather_xg(enc_tab_ref, src_ref, t), h, c, enc_whh)

    # (2) decoder recurrence — h_t stashed to VMEM; vocab projection batched afterwards.
    dec_whh = dec_whh_ref[...]
    for t in range(n_dec):
        h, c = cell(gather_xg(dec_tab_ref, trg_ref, t), h, c, dec_whh)
        hs_ref[t * b_pad:(t + 1) * b_pad, :] = h

    # (3) single lane-dense vocab projection + one store for all decoder timesteps.
    logits = (jnp.dot(hs_ref[...], fc_w_ref[...], preferred_element_type=f32)
              + fc_b_ref[...])                                     # [n_dec*b_pad, Vp]
    out_ref[1:1 + n_dec] = logits.reshape(n_dec, b_pad, v_pad)

    # (4) in-kernel assembly of the constant rows (mirrors the reference pre-loop writes).
    r_ids = jax.lax.broadcasted_iota(jnp.int32, (b_pad, v_pad), 0)
    c_ids = jax.lax.broadcasted_iota(jnp.int32, (b_pad, v_pad), 1)
    out_ref[0] = jnp.where((r_ids == 0) & (c_ids == 0), 1.0, 0.0).astype(f32)
    if trg_len == 7:
        # outputs[6,0,1]=1 survives the loop only when row 6 is the never-written last row.
        out_ref[trg_len - 1] = jnp.where((r_ids == 0) & (c_ids == 1), 1.0, 0.0).astype(f32)
    else:
        out_ref[trg_len - 1] = jnp.zeros((b_pad, v_pad), f32)


# ------------------------------- params / wrapper ------------------------------- #

def init_params(key, src_vocab, trg_vocab, emb_dim, hid_dim):
    ks = jax.random.split(key, 10)
    s = 0.1
    return {
        # encoder
        "enc_emb": jax.random.normal(ks[0], (src_vocab, emb_dim), jnp.float32) * s,
        "enc_wih": jax.random.normal(ks[1], (emb_dim, 4 * hid_dim), jnp.float32) * s,
        "enc_whh": jax.random.normal(ks[2], (hid_dim, 4 * hid_dim), jnp.float32) * s,
        "enc_b":   jax.random.normal(ks[3], (1, 4 * hid_dim), jnp.float32) * s,
        # decoder
        "dec_emb": jax.random.normal(ks[4], (trg_vocab, emb_dim), jnp.float32) * s,
        "dec_wih": jax.random.normal(ks[5], (emb_dim, 4 * hid_dim), jnp.float32) * s,
        "dec_whh": jax.random.normal(ks[6], (hid_dim, 4 * hid_dim), jnp.float32) * s,
        "dec_b":   jax.random.normal(ks[7], (1, 4 * hid_dim), jnp.float32) * s,
        "fc_w":    jax.random.normal(ks[8], (hid_dim, trg_vocab), jnp.float32) * s,
        "fc_b":    jax.random.normal(ks[9], (1, trg_vocab), jnp.float32) * s,
    }


def prepare_params(params, trg_vocab_size):
    """One-time prep: fold x@W_ih + b into the embedding tables, pre-scale the g-gate
    columns by 2 (tanh(a) = 2*sigmoid(2a) - 1), and lane-pad the vocab projection."""
    hid = params["enc_whh"].shape[0]
    v_pad = max(128, ((trg_vocab_size + 127) // 128) * 128)
    hi = jax.lax.Precision.HIGHEST
    gate_scale = jnp.concatenate([jnp.ones((2 * hid,), jnp.float32),
                                  2.0 * jnp.ones((hid,), jnp.float32),
                                  jnp.ones((hid,), jnp.float32)])
    enc_tab = (jnp.dot(params["enc_emb"], params["enc_wih"], precision=hi)
               + params["enc_b"]) * gate_scale
    dec_tab = (jnp.dot(params["dec_emb"], params["dec_wih"], precision=hi)
               + params["dec_b"]) * gate_scale
    pad_v = v_pad - trg_vocab_size
    return {
        "enc_tab": enc_tab.astype(jnp.float32),                    # [src_vocab, 4H]
        "dec_tab": dec_tab.astype(jnp.float32),                    # [trg_vocab, 4H]
        "enc_whh": (params["enc_whh"] * gate_scale).astype(jnp.float32),
        "dec_whh": (params["dec_whh"] * gate_scale).astype(jnp.float32),
        "fc_w": jnp.pad(params["fc_w"], ((0, 0), (0, pad_v))).astype(jnp.float32),
        "fc_b": jnp.pad(params["fc_b"], ((0, 0), (0, pad_v))).astype(jnp.float32),
    }


@functools.partial(jax.jit, static_argnames=("trg_vocab_size", "teacher_forcing_ratio"))
def seq2seq_forward(prep, src, trg, trg_vocab_size, teacher_forcing_ratio=0):
    """Mirrors Seq2Seq.forward.  src/trg: [seq_len, batch] int32."""
    if teacher_forcing_ratio != 0:
        # random.random() > ratio would be stochastic; only the ratio==0 path is implemented.
        raise NotImplementedError("only teacher_forcing_ratio == 0 is supported")

    trg_len, batch = trg.shape
    src_len = src.shape[0]
    n_dec = trg_len - 2                       # loop runs t = 1 .. trg_len-2
    hid = prep["enc_whh"].shape[0]
    v_pad = prep["fc_w"].shape[1]
    b_pad = max(8, ((batch + 7) // 8) * 8)    # sublane-dense batch inside the kernel

    src_i = src.astype(jnp.int32)
    trg_i = trg.astype(jnp.int32)

    n_steps = src_len + n_dec
    flops = 2 * n_steps * b_pad * hid * 4 * hid + 2 * n_dec * b_pad * hid * v_pad
    transcend = n_steps * b_pad * (4 * hid + hid)
    bytes_acc = 4 * (prep["enc_tab"].size + prep["dec_tab"].size + prep["enc_whh"].size
                     + prep["dec_whh"].size + prep["fc_w"].size + prep["fc_b"].size
                     + trg_len * b_pad * v_pad + src_i.size + trg_i.size)

    kernel = functools.partial(_seq2seq_kernel, src_len=src_len, trg_len=trg_len,
                               batch=batch, b_pad=b_pad, hid=hid, v_pad=v_pad)
    out = pl.pallas_call(
        kernel,
        out_shape=jax.ShapeDtypeStruct((trg_len, b_pad, v_pad), jnp.float32),
        in_specs=[_SMEM, _SMEM] + [_VMEM] * 6,
        out_specs=_VMEM,
        scratch_shapes=[pltpu.VMEM((n_dec * b_pad, hid), jnp.float32)],
        cost_estimate=pl.CostEstimate(flops=flops, transcendentals=transcend,
                                      bytes_accessed=bytes_acc),
    )(src_i, trg_i, prep["enc_tab"], prep["dec_tab"],
      prep["enc_whh"], prep["dec_whh"], prep["fc_w"], prep["fc_b"])

    return out[:, :batch, :trg_vocab_size]     # single slice strips batch/vocab padding


# --------------------------- pure-JAX reference (check) -------------------------- #

def _reference_forward(params, src, trg, trg_vocab_size):
    hi = jax.lax.Precision.HIGHEST
    trg_len, batch = trg.shape
    hid = params["enc_whh"].shape[0]

    def cell(x, h, c, w_ih, w_hh, b):
        g = jnp.dot(x, w_ih, precision=hi) + b + jnp.dot(h, w_hh, precision=hi)
        i = jax.nn.sigmoid(g[:, 0 * hid:1 * hid])
        f = jax.nn.sigmoid(g[:, 1 * hid:2 * hid])
        gg = jnp.tanh(g[:, 2 * hid:3 * hid])
        o = jax.nn.sigmoid(g[:, 3 * hid:4 * hid])
        c = f * c + i * gg
        h = o * jnp.tanh(c)
        return h, c

    h = jnp.zeros((batch, hid), jnp.float32)
    c = jnp.zeros((batch, hid), jnp.float32)
    for t in range(src.shape[0]):
        x = params["enc_emb"][src[t]]
        h, c = cell(x, h, c, params["enc_wih"], params["enc_whh"], params["enc_b"])

    outputs = jnp.zeros((trg_len, batch, trg_vocab_size), jnp.float32)
    outputs = outputs.at[0, 0, 0].set(1.0)
    outputs = outputs.at[6, 0, 1].set(1.0)
    for t in range(1, trg_len - 1):            # teacher forcing: input = trg[t-1]
        x = params["dec_emb"][trg[t - 1]]
        h, c = cell(x, h, c, params["dec_wih"], params["dec_whh"], params["dec_b"])
        out = jnp.dot(h, params["fc_w"], precision=hi) + params["fc_b"]
        outputs = outputs.at[t].set(out)
    return outputs


# ------------------------------------ main ------------------------------------- #

if __name__ == "__main__":
    SRC_VOCAB = 24
    TRG_VOCAB = 16      # stands in for len(vec)
    EMB_DIM = 32
    HID_DIM = 32
    SRC_LEN = 8
    TRG_LEN = 8
    BATCH = 2

    key = jax.random.PRNGKey(0)
    k_param, k_src, k_trg = jax.random.split(key, 3)

    params = init_params(k_param, SRC_VOCAB, TRG_VOCAB, EMB_DIM, HID_DIM)
    prep = prepare_params(params, TRG_VOCAB)   # one-time folding / scaling / padding

    src = jax.random.randint(k_src, (SRC_LEN, BATCH), 0, SRC_VOCAB, dtype=jnp.int32)
    trg = jax.random.randint(k_trg, (TRG_LEN, BATCH), 0, TRG_VOCAB, dtype=jnp.int32)

    outputs = seq2seq_forward(prep, src, trg, TRG_VOCAB, teacher_forcing_ratio=0)
    outputs = jax.block_until_ready(outputs)

    assert outputs.shape == (TRG_LEN, BATCH, TRG_VOCAB)
    assert bool(jnp.isfinite(outputs).all())

    ref = _reference_forward(params, src, trg, TRG_VOCAB)
    max_diff = float(jnp.max(jnp.abs(outputs - ref)))
    assert bool(jnp.allclose(outputs, ref, atol=2e-3, rtol=2e-3)), f"max|diff|={max_diff}"

    print("KERNEL_OK")
</pallas_src>

<mosaic_0001>
module attributes {stable_mosaic.version = 11 : i64} {
  func.func @_seq2seq_kernel(%arg0: memref<8x2xi32, #tpu.memory_space<smem>>, %arg1: memref<8x2xi32, #tpu.memory_space<smem>>, %arg2: memref<24x128xf32, #tpu.memory_space<vmem>>, %arg3: memref<16x128xf32, #tpu.memory_space<vmem>>, %arg4: memref<32x128xf32, #tpu.memory_space<vmem>>, %arg5: memref<32x128xf32, #tpu.memory_space<vmem>>, %arg6: memref<32x128xf32, #tpu.memory_space<vmem>>, %arg7: memref<1x128xf32, #tpu.memory_space<vmem>>, %arg8: memref<8x8x128xf32, #tpu.memory_space<vmem>>, %arg9: memref<48x32xf32, #tpu.memory_space<vmem>>) attributes {dimension_semantics = [], scalar_prefetch = 0 : i64, scratch_operands = 1 : i64, tpu.core_type = #tpu.core_type<tc>} {
    %cst = arith.constant 0.000000e+00 : f32
    %0 = vector.broadcast %cst : f32 to vector<8x32xf32>
    %cst_0 = arith.constant 0.000000e+00 : f32
    %1 = vector.broadcast %cst_0 : f32 to vector<8x32xf32>
    %c0 = arith.constant 0 : index
    %c0_1 = arith.constant 0 : index
    %2 = vector.load %arg4[%c0, %c0_1] : memref<32x128xf32, #tpu.memory_space<vmem>>, vector<32x128xf32>
    %c0_2 = arith.constant 0 : index
    %c0_3 = arith.constant 0 : index
    %3 = memref.load %arg0[%c0_2, %c0_3] : memref<8x2xi32, #tpu.memory_space<smem>>
    %4 = arith.index_cast %3 : i32 to index
    %c0_4 = arith.constant 0 : index
    %5 = vector.load %arg2[%4, %c0_4] : memref<24x128xf32, #tpu.memory_space<vmem>>, vector<1x128xf32>
    %c0_5 = arith.constant 0 : index
    %c1 = arith.constant 1 : index
    %6 = memref.load %arg0[%c0_5, %c1] : memref<8x2xi32, #tpu.memory_space<smem>>
    %7 = arith.index_cast %6 : i32 to index
    %c0_6 = arith.constant 0 : index
    %8 = vector.load %arg2[%7, %c0_6] : memref<24x128xf32, #tpu.memory_space<vmem>>, vector<1x128xf32>
    %cst_7 = arith.constant 0.000000e+00 : f32
    %9 = vector.broadcast %cst_7 : f32 to vector<6x128xf32>
    %10 = tpu.concatenate %5, %8, %9 in 0 : vector<1x128xf32>, vector<1x128xf32>, vector<6x128xf32> -> vector<8x128xf32>
    %cst_8 = arith.constant dense<0.000000e+00> : vector<8x128xf32>
    %11 = tpu.matmul %0, %2, %cst_8 {dimension_numbers = #tpu.dot_dimension_numbers<[1], [0], [0], [1], [0, 0, 1, 1], [], []>} : vector<8x32xf32>, vector<32x128xf32>, vector<8x128xf32> -> vector<8x128xf32>
    %12 = arith.addf %10, %11 : vector<8x128xf32>
    %13 = arith.negf %12 : vector<8x128xf32>
    %14 = math.exp %13 : vector<8x128xf32>
    %cst_9 = arith.constant 1.000000e+00 : f32
    %15 = vector.broadcast %cst_9 : f32 to vector<8x128xf32>
    %16 = arith.addf %15, %14 : vector<8x128xf32>
    %17 = arith.divf %15, %16 : vector<8x128xf32>
    %18 = vector.extract_strided_slice %17 {offsets = [0, 0], sizes = [8, 32], strides = [1, 1]} : vector<8x128xf32> to vector<8x32xf32>
    %19 = vector.extract_strided_slice %17 {offsets = [0, 32], sizes = [8, 32], strides = [1, 1]} : vector<8x128xf32> to vector<8x32xf32>
    %20 = vector.extract_strided_slice %17 {offsets = [0, 64], sizes = [8, 32], strides = [1, 1]} : vector<8x128xf32> to vector<8x32xf32>
    %cst_10 = arith.constant 2.000000e+00 : f32
    %21 = vector.broadcast %cst_10 : f32 to vector<8x32xf32>
    %22 = arith.mulf %21, %20 : vector<8x32xf32>
    %cst_11 = arith.constant 1.000000e+00 : f32
    %23 = vector.broadcast %cst_11 : f32 to vector<8x32xf32>
    %24 = arith.subf %22, %23 : vector<8x32xf32>
    %25 = vector.extract_strided_slice %17 {offsets = [0, 96], sizes = [8, 32], strides = [1, 1]} : vector<8x128xf32> to vector<8x32xf32>
    %26 = arith.mulf %19, %1 : vector<8x32xf32>
    %27 = arith.mulf %18, %24 : vector<8x32xf32>
    %28 = arith.addf %26, %27 : vector<8x32xf32>
    %29 = math.tanh %28 : vector<8x32xf32>
    %30 = arith.mulf %25, %29 : vector<8x32xf32>
    %c1_12 = arith.constant 1 : index
    %c0_13 = arith.constant 0 : index
    %31 = memref.load %arg0[%c1_12, %c0_13] : memref<8x2xi32, #tpu.memory_space<smem>>
    %32 = arith.index_cast %31 : i32 to index
    %c0_14 = arith.constant 0 : index
    %33 = vector.load %arg2[%32, %c0_14] : memref<24x128xf32, #tpu.memory_space<vmem>>, vector<1x128xf32>
    %c1_15 = arith.constant 1 : index
    %c1_16 = arith.constant 1 : index
    %34 = memref.load %arg0[%c1_15, %c1_16] : memref<8x2xi32, #tpu.memory_space<smem>>
    %35 = arith.index_cast %34 : i32 to index
    %c0_17 = arith.constant 0 : index
    %36 = vector.load %arg2[%35, %c0_17] : memref<24x128xf32, #tpu.memory_space<vmem>>, vector<1x128xf32>
    %cst_18 = arith.constant 0.000000e+00 : f32
    %37 = vector.broadcast %cst_18 : f32 to vector<6x128xf32>
    %38 = tpu.concatenate %33, %36, %37 in 0 : vector<1x128xf32>, vector<1x128xf32>, vector<6x128xf32> -> vector<8x128xf32>
    %cst_19 = arith.constant dense<0.000000e+00> : vector<8x128xf32>
    %39 = tpu.matmul %30, %2, %cst_19 {dimension_numbers = #tpu.dot_dimension_numbers<[1], [0], [0], [1], [0, 0, 1, 1], [], []>} : vector<8x32xf32>, vector<32x128xf32>, vector<8x128xf32> -> vector<8x128xf32>
    %40 = arith.addf %38, %39 : vector<8x128xf32>
    %41 = arith.negf %40 : vector<8x128xf32>
    %42 = math.exp %41 : vector<8x128xf32>
    %cst_20 = arith.constant 1.000000e+00 : f32
    %43 = vector.broadcast %cst_20 : f32 to vector<8x128xf32>
    %44 = arith.addf %43, %42 : vector<8x128xf32>
    %45 = arith.divf %43, %44 : vector<8x128xf32>
    %46 = vector.extract_strided_slice %45 {offsets = [0, 0], sizes = [8, 32], strides = [1, 1]} : vector<8x128xf32> to vector<8x32xf32>
    %47 = vector.extract_strided_slice %45 {offsets = [0, 32], sizes = [8, 32], strides = [1, 1]} : vector<8x128xf32> to vector<8x32xf32>
    %48 = vector.extract_strided_slice %45 {offsets = [0, 64], sizes = [8, 32], strides = [1, 1]} : vector<8x128xf32> to vector<8x32xf32>
    %cst_21 = arith.constant 2.000000e+00 : f32
    %49 = vector.broadcast %cst_21 : f32 to vector<8x32xf32>
    %50 = arith.mulf %49, %48 : vector<8x32xf32>
    %cst_22 = arith.constant 1.000000e+00 : f32
    %51 = vector.broadcast %cst_22 : f32 to vector<8x32xf32>
    %52 = arith.subf %50, %51 : vector<8x32xf32>
    %53 = vector.extract_strided_slice %45 {offsets = [0, 96], sizes = [8, 32], strides = [1, 1]} : vector<8x128xf32> to vector<8x32xf32>
    %54 = arith.mulf %47, %28 : vector<8x32xf32>
    %55 = arith.mulf %46, %52 : vector<8x32xf32>
    %56 = arith.addf %54, %55 : vector<8x32xf32>
    %57 = math.tanh %56 : vector<8x32xf32>
    %58 = arith.mulf %53, %57 : vector<8x32xf32>
    %c2 = arith.constant 2 : index
    %c0_23 = arith.constant 0 : index
    %59 = memref.load %arg0[%c2, %c0_23] : memref<8x2xi32, #tpu.memory_space<smem>>
    %60 = arith.index_cast %59 : i32 to index
    %c0_24 = arith.constant 0 : index
    %61 = vector.load %arg2[%60, %c0_24] : memref<24x128xf32, #tpu.memory_space<vmem>>, vector<1x128xf32>
    %c2_25 = arith.constant 2 : index
    %c1_26 = arith.constant 1 : index
    %62 = memref.load %arg0[%c2_25, %c1_26] : memref<8x2xi32, #tpu.memory_space<smem>>
    %63 = arith.index_cast %62 : i32 to index
    %c0_27 = arith.constant 0 : index
    %64 = vector.load %arg2[%63, %c0_27] : memref<24x128xf32, #tpu.memory_space<vmem>>, vector<1x128xf32>
    %cst_28 = arith.constant 0.000000e+00 : f32
    %65 = vector.broadcast %cst_28 : f32 to vector<6x128xf32>
    %66 = tpu.concatenate %61, %64, %65 in 0 : vector<1x128xf32>, vector<1x128xf32>, vector<6x128xf32> -> vector<8x128xf32>
    %cst_29 = arith.constant dense<0.000000e+00> : vector<8x128xf32>
    %67 = tpu.matmul %58, %2, %cst_29 {dimension_numbers = #tpu.dot_dimension_numbers<[1], [0], [0], [1], [0, 0, 1, 1], [], []>} : vector<8x32xf32>, vector<32x128xf32>, vector<8x128xf32> -> vector<8x128xf32>
    %68 = arith.addf %66, %67 : vector<8x128xf32>
    %69 = arith.negf %68 : vector<8x128xf32>
    %70 = math.exp %69 : vector<8x128xf32>
    %cst_30 = arith.constant 1.000000e+00 : f32
    %71 = vector.broadcast %cst_30 : f32 to vector<8x128xf32>
    %72 = arith.addf %71, %70 : vector<8x128xf32>
    %73 = arith.divf %71, %72 : vector<8x128xf32>
    %74 = vector.extract_strided_slice %73 {offsets = [0, 0], sizes = [8, 32], strides = [1, 1]} : vector<8x128xf32> to vector<8x32xf32>
    %75 = vector.extract_strided_slice %73 {offsets = [0, 32], sizes = [8, 32], strides = [1, 1]} : vector<8x128xf32> to vector<8x32xf32>
    %76 = vector.extract_strided_slice %73 {offsets = [0, 64], sizes = [8, 32], strides = [1, 1]} : vector<8x128xf32> to vector<8x32xf32>
    %cst_31 = arith.constant 2.000000e+00 : f32
    %77 = vector.broadcast %cst_31 : f32 to vector<8x32xf32>
    %78 = arith.mulf %77, %76 : vector<8x32xf32>
    %cst_32 = arith.constant 1.000000e+00 : f32
    %79 = vector.broadcast %cst_32 : f32 to vector<8x32xf32>
    %80 = arith.subf %78, %79 : vector<8x32xf32>
    %81 = vector.extract_strided_slice %73 {offsets = [0, 96], sizes = [8, 32], strides = [1, 1]} : vector<8x128xf32> to vector<8x32xf32>
    %82 = arith.mulf %75, %56 : vector<8x32xf32>
    %83 = arith.mulf %74, %80 : vector<8x32xf32>
    %84 = arith.addf %82, %83 : vector<8x32xf32>
    %85 = math.tanh %84 : vector<8x32xf32>
    %86 = arith.mulf %81, %85 : vector<8x32xf32>
    %c3 = arith.constant 3 : index
    %c0_33 = arith.constant 0 : index
    %87 = memref.load %arg0[%c3, %c0_33] : memref<8x2xi32, #tpu.memory_space<smem>>
    %88 = arith.index_cast %87 : i32 to index
    %c0_34 = arith.constant 0 : index
    %89 = vector.load %arg2[%88, %c0_34] : memref<24x128xf32, #tpu.memory_space<vmem>>, vector<1x128xf32>
    %c3_35 = arith.constant 3 : index
    %c1_36 = arith.constant 1 : index
    %90 = memref.load %arg0[%c3_35, %c1_36] : memref<8x2xi32, #tpu.memory_space<smem>>
    %91 = arith.index_cast %90 : i32 to index
    %c0_37 = arith.constant 0 : index
    %92 = vector.load %arg2[%91, %c0_37] : memref<24x128xf32, #tpu.memory_space<vmem>>, vector<1x128xf32>
    %cst_38 = arith.constant 0.000000e+00 : f32
    %93 = vector.broadcast %cst_38 : f32 to vector<6x128xf32>
    %94 = tpu.concatenate %89, %92, %93 in 0 : vector<1x128xf32>, vector<1x128xf32>, vector<6x128xf32> -> vector<8x128xf32>
    %cst_39 = arith.constant dense<0.000000e+00> : vector<8x128xf32>
    %95 = tpu.matmul %86, %2, %cst_39 {dimension_numbers = #tpu.dot_dimension_numbers<[1], [0], [0], [1], [0, 0, 1, 1], [], []>} : vector<8x32xf32>, vector<32x128xf32>, vector<8x128xf32> -> vector<8x128xf32>
    %96 = arith.addf %94, %95 : vector<8x128xf32>
    %97 = arith.negf %96 : vector<8x128xf32>
    %98 = math.exp %97 : vector<8x128xf32>
    %cst_40 = arith.constant 1.000000e+00 : f32
    %99 = vector.broadcast %cst_40 : f32 to vector<8x128xf32>
    %100 = arith.addf %99, %98 : vector<8x128xf32>
    %101 = arith.divf %99, %100 : vector<8x128xf32>
    %102 = vector.extract_strided_slice %101 {offsets = [0, 0], sizes = [8, 32], strides = [1, 1]} : vector<8x128xf32> to vector<8x32xf32>
    %103 = vector.extract_strided_slice %101 {offsets = [0, 32], sizes = [8, 32], strides = [1, 1]} : vector<8x128xf32> to vector<8x32xf32>
    %104 = vector.extract_strided_slice %101 {offsets = [0, 64], sizes = [8, 32], strides = [1, 1]} : vector<8x128xf32> to vector<8x32xf32>
    %cst_41 = arith.constant 2.000000e+00 : f32
    %105 = vector.broadcast %cst_41 : f32 to vector<8x32xf32>
    %106 = arith.mulf %105, %104 : vector<8x32xf32>
    %cst_42 = arith.constant 1.000000e+00 : f32
    %107 = vector.broadcast %cst_42 : f32 to vector<8x32xf32>
    %108 = arith.subf %106, %107 : vector<8x32xf32>
    %109 = vector.extract_strided_slice %101 {offsets = [0, 96], sizes = [8, 32], strides = [1, 1]} : vector<8x128xf32> to vector<8x32xf32>
    %110 = arith.mulf %103, %84 : vector<8x32xf32>
    %111 = arith.mulf %102, %108 : vector<8x32xf32>
    %112 = arith.addf %110, %111 : vector<8x32xf32>
    %113 = math.tanh %112 : vector<8x32xf32>
    %114 = arith.mulf %109, %113 : vector<8x32xf32>
    %c4 = arith.constant 4 : index
    %c0_43 = arith.constant 0 : index
    %115 = memref.load %arg0[%c4, %c0_43] : memref<8x2xi32, #tpu.memory_space<smem>>
    %116 = arith.index_cast %115 : i32 to index
    %c0_44 = arith.constant 0 : index
    %117 = vector.load %arg2[%116, %c0_44] : memref<24x128xf32, #tpu.memory_space<vmem>>, vector<1x128xf32>
    %c4_45 = arith.constant 4 : index
    %c1_46 = arith.constant 1 : index
    %118 = memref.load %arg0[%c4_45, %c1_46] : memref<8x2xi32, #tpu.memory_space<smem>>
    %119 = arith.index_cast %118 : i32 to index
    %c0_47 = arith.constant 0 : index
    %120 = vector.load %arg2[%119, %c0_47] : memref<24x128xf32, #tpu.memory_space<vmem>>, vector<1x128xf32>
    %cst_48 = arith.constant 0.000000e+00 : f32
    %121 = vector.broadcast %cst_48 : f32 to vector<6x128xf32>
    %122 = tpu.concatenate %117, %120, %121 in 0 : vector<1x128xf32>, vector<1x128xf32>, vector<6x128xf32> -> vector<8x128xf32>
    %cst_49 = arith.constant dense<0.000000e+00> : vector<8x128xf32>
    %123 = tpu.matmul %114, %2, %cst_49 {dimension_numbers = #tpu.dot_dimension_numbers<[1], [0], [0], [1], [0, 0, 1, 1], [], []>} : vector<8x32xf32>, vector<32x128xf32>, vector<8x128xf32> -> vector<8x128xf32>
    %124 = arith.addf %122, %123 : vector<8x128xf32>
    %125 = arith.negf %124 : vector<8x128xf32>
    %126 = math.exp %125 : vector<8x128xf32>
    %cst_50 = arith.constant 1.000000e+00 : f32
    %127 = vector.broadcast %cst_50 : f32 to vector<8x128xf32>
    %128 = arith.addf %127, %126 : vector<8x128xf32>
    %129 = arith.divf %127, %128 : vector<8x128xf32>
    %130 = vector.extract_strided_slice %129 {offsets = [0, 0], sizes = [8, 32], strides = [1, 1]} : vector<8x128xf32> to vector<8x32xf32>
    %131 = vector.extract_strided_slice %129 {offsets = [0, 32], sizes = [8, 32], strides = [1, 1]} : vector<8x128xf32> to vector<8x32xf32>
    %132 = vector.extract_strided_slice %129 {offsets = [0, 64], sizes = [8, 32], strides = [1, 1]} : vector<8x128xf32> to vector<8x32xf32>
    %cst_51 = arith.constant 2.000000e+00 : f32
    %133 = vector.broadcast %cst_51 : f32 to vector<8x32xf32>
    %134 = arith.mulf %133, %132 : vector<8x32xf32>
    %cst_52 = arith.constant 1.000000e+00 : f32
    %135 = vector.broadcast %cst_52 : f32 to vector<8x32xf32>
    %136 = arith.subf %134, %135 : vector<8x32xf32>
    %137 = vector.extract_strided_slice %129 {offsets = [0, 96], sizes = [8, 32], strides = [1, 1]} : vector<8x128xf32> to vector<8x32xf32>
    %138 = arith.mulf %131, %112 : vector<8x32xf32>
    %139 = arith.mulf %130, %136 : vector<8x32xf32>
    %140 = arith.addf %138, %139 : vector<8x32xf32>
    %141 = math.tanh %140 : vector<8x32xf32>
    %142 = arith.mulf %137, %141 : vector<8x32xf32>
    %c5 = arith.constant 5 : index
    %c0_53 = arith.constant 0 : index
    %143 = memref.load %arg0[%c5, %c0_53] : memref<8x2xi32, #tpu.memory_space<smem>>
    %144 = arith.index_cast %143 : i32 to index
    %c0_54 = arith.constant 0 : index
    %145 = vector.load %arg2[%144, %c0_54] : memref<24x128xf32, #tpu.memory_space<vmem>>, vector<1x128xf32>
    %c5_55 = arith.constant 5 : index
    %c1_56 = arith.constant 1 : index
    %146 = memref.load %arg0[%c5_55, %c1_56] : memref<8x2xi32, #tpu.memory_space<smem>>
    %147 = arith.index_cast %146 : i32 to index
    %c0_57 = arith.constant 0 : index
    %148 = vector.load %arg2[%147, %c0_57] : memref<24x128xf32, #tpu.memory_space<vmem>>, vector<1x128xf32>
    %cst_58 = arith.constant 0.000000e+00 : f32
    %149 = vector.broadcast %cst_58 : f32 to vector<6x128xf32>
    %150 = tpu.concatenate %145, %148, %149 in 0 : vector<1x128xf32>, vector<1x128xf32>, vector<6x128xf32> -> vector<8x128xf32>
    %cst_59 = arith.constant dense<0.000000e+00> : vector<8x128xf32>
    %151 = tpu.matmul %142, %2, %cst_59 {dimension_numbers = #tpu.dot_dimension_numbers<[1], [0], [0], [1], [0, 0, 1, 1], [], []>} : vector<8x32xf32>, vector<32x128xf32>, vector<8x128xf32> -> vector<8x128xf32>
    %152 = arith.addf %150, %151 : vector<8x128xf32>
    %153 = arith.negf %152 : vector<8x128xf32>
    %154 = math.exp %153 : vector<8x128xf32>
    %cst_60 = arith.constant 1.000000e+00 : f32
    %155 = vector.broadcast %cst_60 : f32 to vector<8x128xf32>
    %156 = arith.addf %155, %154 : vector<8x128xf32>
    %157 = arith.divf %155, %156 : vector<8x128xf32>
    %158 = vector.extract_strided_slice %157 {offsets = [0, 0], sizes = [8, 32], strides = [1, 1]} : vector<8x128xf32> to vector<8x32xf32>
    %159 = vector.extract_strided_slice %157 {offsets = [0, 32], sizes = [8, 32], strides = [1, 1]} : vector<8x128xf32> to vector<8x32xf32>
    %160 = vector.extract_strided_slice %157 {offsets = [0, 64], sizes = [8, 32], strides = [1, 1]} : vector<8x128xf32> to vector<8x32xf32>
    %cst_61 = arith.constant 2.000000e+00 : f32
    %161 = vector.broadcast %cst_61 : f32 to vector<8x32xf32>
    %162 = arith.mulf %161, %160 : vector<8x32xf32>
    %cst_62 = arith.constant 1.000000e+00 : f32
    %163 = vector.broadcast %cst_62 : f32 to vector<8x32xf32>
    %164 = arith.subf %162, %163 : vector<8x32xf32>
    %165 = vector.extract_strided_slice %157 {offsets = [0, 96], sizes = [8, 32], strides = [1, 1]} : vector<8x128xf32> to vector<8x32xf32>
    %166 = arith.mulf %159, %140 : vector<8x32xf32>
    %167 = arith.mulf %158, %164 : vector<8x32xf32>
    %168 = arith.addf %166, %167 : vector<8x32xf32>
    %169 = math.tanh %168 : vector<8x32xf32>
    %170 = arith.mulf %165, %169 : vector<8x32xf32>
    %c6 = arith.constant 6 : index
    %c0_63 = arith.constant 0 : index
    %171 = memref.load %arg0[%c6, %c0_63] : memref<8x2xi32, #tpu.memory_space<smem>>
    %172 = arith.index_cast %171 : i32 to index
    %c0_64 = arith.constant 0 : index
    %173 = vector.load %arg2[%172, %c0_64] : memref<24x128xf32, #tpu.memory_space<vmem>>, vector<1x128xf32>
    %c6_65 = arith.constant 6 : index
    %c1_66 = arith.constant 1 : index
    %174 = memref.load %arg0[%c6_65, %c1_66] : memref<8x2xi32, #tpu.memory_space<smem>>
    %175 = arith.index_cast %174 : i32 to index
    %c0_67 = arith.constant 0 : index
    %176 = vector.load %arg2[%175, %c0_67] : memref<24x128xf32, #tpu.memory_space<vmem>>, vector<1x128xf32>
    %cst_68 = arith.constant 0.000000e+00 : f32
    %177 = vector.broadcast %cst_68 : f32 to vector<6x128xf32>
    %178 = tpu.concatenate %173, %176, %177 in 0 : vector<1x128xf32>, vector<1x128xf32>, vector<6x128xf32> -> vector<8x128xf32>
    %cst_69 = arith.constant dense<0.000000e+00> : vector<8x128xf32>
    %179 = tpu.matmul %170, %2, %cst_69 {dimension_numbers = #tpu.dot_dimension_numbers<[1], [0], [0], [1], [0, 0, 1, 1], [], []>} : vector<8x32xf32>, vector<32x128xf32>, vector<8x128xf32> -> vector<8x128xf32>
    %180 = arith.addf %178, %179 : vector<8x128xf32>
    %181 = arith.negf %180 : vector<8x128xf32>
    %182 = math.exp %181 : vector<8x128xf32>
    %cst_70 = arith.constant 1.000000e+00 : f32
    %183 = vector.broadcast %cst_70 : f32 to vector<8x128xf32>
    %184 = arith.addf %183, %182 : vector<8x128xf32>
    %185 = arith.divf %183, %184 : vector<8x128xf32>
    %186 = vector.extract_strided_slice %185 {offsets = [0, 0], sizes = [8, 32], strides = [1, 1]} : vector<8x128xf32> to vector<8x32xf32>
    %187 = vector.extract_strided_slice %185 {offsets = [0, 32], sizes = [8, 32], strides = [1, 1]} : vector<8x128xf32> to vector<8x32xf32>
    %188 = vector.extract_strided_slice %185 {offsets = [0, 64], sizes = [8, 32], strides = [1, 1]} : vector<8x128xf32> to vector<8x32xf32>
    %cst_71 = arith.constant 2.000000e+00 : f32
    %189 = vector.broadcast %cst_71 : f32 to vector<8x32xf32>
    %190 = arith.mulf %189, %188 : vector<8x32xf32>
    %cst_72 = arith.constant 1.000000e+00 : f32
    %191 = vector.broadcast %cst_72 : f32 to vector<8x32xf32>
    %192 = arith.subf %190, %191 : vector<8x32xf32>
    %193 = vector.extract_strided_slice %185 {offsets = [0, 96], sizes = [8, 32], strides = [1, 1]} : vector<8x128xf32> to vector<8x32xf32>
    %194 = arith.mulf %187, %168 : vector<8x32xf32>
    %195 = arith.mulf %186, %192 : vector<8x32xf32>
    %196 = arith.addf %194, %195 : vector<8x32xf32>
    %197 = math.tanh %196 : vector<8x32xf32>
    %198 = arith.mulf %193, %197 : vector<8x32xf32>
    %c7 = arith.constant 7 : index
    %c0_73 = arith.constant 0 : index
    %199 = memref.load %arg0[%c7, %c0_73] : memref<8x2xi32, #tpu.memory_space<smem>>
    %200 = arith.index_cast %199 : i32 to index
    %c0_74 = arith.constant 0 : index
    %201 = vector.load %arg2[%200, %c0_74] : memref<24x128xf32, #tpu.memory_space<vmem>>, vector<1x128xf32>
    %c7_75 = arith.constant 7 : index
    %c1_76 = arith.constant 1 : index
    %202 = memref.load %arg0[%c7_75, %c1_76] : memref<8x2xi32, #tpu.memory_space<smem>>
    %203 = arith.index_cast %202 : i32 to index
    %c0_77 = arith.constant 0 : index
    %204 = vector.load %arg2[%203, %c0_77] : memref<24x128xf32, #tpu.memory_space<vmem>>, vector<1x128xf32>
    %cst_78 = arith.constant 0.000000e+00 : f32
    %205 = vector.broadcast %cst_78 : f32 to vector<6x128xf32>
    %206 = tpu.concatenate %201, %204, %205 in 0 : vector<1x128xf32>, vector<1x128xf32>, vector<6x128xf32> -> vector<8x128xf32>
    %cst_79 = arith.constant dense<0.000000e+00> : vector<8x128xf32>
    %207 = tpu.matmul %198, %2, %cst_79 {dimension_numbers = #tpu.dot_dimension_numbers<[1], [0], [0], [1], [0, 0, 1, 1], [], []>} : vector<8x32xf32>, vector<32x128xf32>, vector<8x128xf32> -> vector<8x128xf32>
    %208 = arith.addf %206, %207 : vector<8x128xf32>
    %209 = arith.negf %208 : vector<8x128xf32>
    %210 = math.exp %209 : vector<8x128xf32>
    %cst_80 = arith.constant 1.000000e+00 : f32
    %211 = vector.broadcast %cst_80 : f32 to vector<8x128xf32>
    %212 = arith.addf %211, %210 : vector<8x128xf32>
    %213 = arith.divf %211, %212 : vector<8x128xf32>
    %214 = vector.extract_strided_slice %213 {offsets = [0, 0], sizes = [8, 32], strides = [1, 1]} : vector<8x128xf32> to vector<8x32xf32>
    %215 = vector.extract_strided_slice %213 {offsets = [0, 32], sizes = [8, 32], strides = [1, 1]} : vector<8x128xf32> to vector<8x32xf32>
    %216 = vector.extract_strided_slice %213 {offsets = [0, 64], sizes = [8, 32], strides = [1, 1]} : vector<8x128xf32> to vector<8x32xf32>
    %cst_81 = arith.constant 2.000000e+00 : f32
    %217 = vector.broadcast %cst_81 : f32 to vector<8x32xf32>
    %218 = arith.mulf %217, %216 : vector<8x32xf32>
    %cst_82 = arith.constant 1.000000e+00 : f32
    %219 = vector.broadcast %cst_82 : f32 to vector<8x32xf32>
    %220 = arith.subf %218, %219 : vector<8x32xf32>
    %221 = vector.extract_strided_slice %213 {offsets = [0, 96], sizes = [8, 32], strides = [1, 1]} : vector<8x128xf32> to vector<8x32xf32>
    %222 = arith.mulf %215, %196 : vector<8x32xf32>
    %223 = arith.mulf %214, %220 : vector<8x32xf32>
    %224 = arith.addf %222, %223 : vector<8x32xf32>
    %225 = math.tanh %224 : vector<8x32xf32>
    %226 = arith.mulf %221, %225 : vector<8x32xf32>
    %c0_83 = arith.constant 0 : index
    %c0_84 = arith.constant 0 : index
    %227 = vector.load %arg5[%c0_83, %c0_84] : memref<32x128xf32, #tpu.memory_space<vmem>>, vector<32x128xf32>
    %c0_85 = arith.constant 0 : index
    %c0_86 = arith.constant 0 : index
    %228 = memref.load %arg1[%c0_85, %c0_86] : memref<8x2xi32, #tpu.memory_space<smem>>
    %229 = arith.index_cast %228 : i32 to index
    %c0_87 = arith.constant 0 : index
    %230 = vector.load %arg3[%229, %c0_87] : memref<16x128xf32, #tpu.memory_space<vmem>>, vector<1x128xf32>
    %c0_88 = arith.constant 0 : index
    %c1_89 = arith.constant 1 : index
    %231 = memref.load %arg1[%c0_88, %c1_89] : memref<8x2xi32, #tpu.memory_space<smem>>
    %232 = arith.index_cast %231 : i32 to index
    %c0_90 = arith.constant 0 : index
    %233 = vector.load %arg3[%232, %c0_90] : memref<16x128xf32, #tpu.memory_space<vmem>>, vector<1x128xf32>
    %cst_91 = arith.constant 0.000000e+00 : f32
    %234 = vector.broadcast %cst_91 : f32 to vector<6x128xf32>
    %235 = tpu.concatenate %230, %233, %234 in 0 : vector<1x128xf32>, vector<1x128xf32>, vector<6x128xf32> -> vector<8x128xf32>
    %cst_92 = arith.constant dense<0.000000e+00> : vector<8x128xf32>
    %236 = tpu.matmul %226, %227, %cst_92 {dimension_numbers = #tpu.dot_dimension_numbers<[1], [0], [0], [1], [0, 0, 1, 1], [], []>} : vector<8x32xf32>, vector<32x128xf32>, vector<8x128xf32> -> vector<8x128xf32>
    %237 = arith.addf %235, %236 : vector<8x128xf32>
    %238 = arith.negf %237 : vector<8x128xf32>
    %239 = math.exp %238 : vector<8x128xf32>
    %cst_93 = arith.constant 1.000000e+00 : f32
    %240 = vector.broadcast %cst_93 : f32 to vector<8x128xf32>
    %241 = arith.addf %240, %239 : vector<8x128xf32>
    %242 = arith.divf %240, %241 : vector<8x128xf32>
    %243 = vector.extract_strided_slice %242 {offsets = [0, 0], sizes = [8, 32], strides = [1, 1]} : vector<8x128xf32> to vector<8x32xf32>
    %244 = vector.extract_strided_slice %242 {offsets = [0, 32], sizes = [8, 32], strides = [1, 1]} : vector<8x128xf32> to vector<8x32xf32>
    %245 = vector.extract_strided_slice %242 {offsets = [0, 64], sizes = [8, 32], strides = [1, 1]} : vector<8x128xf32> to vector<8x32xf32>
    %cst_94 = arith.constant 2.000000e+00 : f32
    %246 = vector.broadcast %cst_94 : f32 to vector<8x32xf32>
    %247 = arith.mulf %246, %245 : vector<8x32xf32>
    %cst_95 = arith.constant 1.000000e+00 : f32
    %248 = vector.broadcast %cst_95 : f32 to vector<8x32xf32>
    %249 = arith.subf %247, %248 : vector<8x32xf32>
    %250 = vector.extract_strided_slice %242 {offsets = [0, 96], sizes = [8, 32], strides = [1, 1]} : vector<8x128xf32> to vector<8x32xf32>
    %251 = arith.mulf %244, %224 : vector<8x32xf32>
    %252 = arith.mulf %243, %249 : vector<8x32xf32>
    %253 = arith.addf %251, %252 : vector<8x32xf32>
    %254 = math.tanh %253 : vector<8x32xf32>
    %255 = arith.mulf %250, %254 : vector<8x32xf32>
    %c0_96 = arith.constant 0 : index
    %c0_97 = arith.constant 0 : index
    %256 = vector.load %arg9[%c0_96, %c0_97] : memref<48x32xf32, #tpu.memory_space<vmem>>, vector<8x32xf32>
    tpu.vector_store %arg9[%c0_96, %c0_97], %255 {strides = array<i32>} : memref<48x32xf32, #tpu.memory_space<vmem>>, vector<8x32xf32>,
    %c1_98 = arith.constant 1 : index
    %c0_99 = arith.constant 0 : index
    %257 = memref.load %arg1[%c1_98, %c0_99] : memref<8x2xi32, #tpu.memory_space<smem>>
    %258 = arith.index_cast %257 : i32 to index
    %c0_100 = arith.constant 0 : index
    %259 = vector.load %arg3[%258, %c0_100] : memref<16x128xf32, #tpu.memory_space<vmem>>, vector<1x128xf32>
    %c1_101 = arith.constant 1 : index
    %c1_102 = arith.constant 1 : index
    %260 = memref.load %arg1[%c1_101, %c1_102] : memref<8x2xi32, #tpu.memory_space<smem>>
    %261 = arith.index_cast %260 : i32 to index
    %c0_103 = arith.constant 0 : index
    %262 = vector.load %arg3[%261, %c0_103] : memref<16x128xf32, #tpu.memory_space<vmem>>, vector<1x128xf32>
    %cst_104 = arith.constant 0.000000e+00 : f32
    %263 = vector.broadcast %cst_104 : f32 to vector<6x128xf32>
    %264 = tpu.concatenate %259, %262, %263 in 0 : vector<1x128xf32>, vector<1x128xf32>, vector<6x128xf32> -> vector<8x128xf32>
    %cst_105 = arith.constant dense<0.000000e+00> : vector<8x128xf32>
    %265 = tpu.matmul %255, %227, %cst_105 {dimension_numbers = #tpu.dot_dimension_numbers<[1], [0], [0], [1], [0, 0, 1, 1], [], []>} : vector<8x32xf32>, vector<32x128xf32>, vector<8x128xf32> -> vector<8x128xf32>
    %266 = arith.addf %264, %265 : vector<8x128xf32>
    %267 = arith.negf %266 : vector<8x128xf32>
    %268 = math.exp %267 : vector<8x128xf32>
    %cst_106 = arith.constant 1.000000e+00 : f32
    %269 = vector.broadcast %cst_106 : f32 to vector<8x128xf32>
    %270 = arith.addf %269, %268 : vector<8x128xf32>
    %271 = arith.divf %269, %270 : vector<8x128xf32>
    %272 = vector.extract_strided_slice %271 {offsets = [0, 0], sizes = [8, 32], strides = [1, 1]} : vector<8x128xf32> to vector<8x32xf32>
    %273 = vector.extract_strided_slice %271 {offsets = [0, 32], sizes = [8, 32], strides = [1, 1]} : vector<8x128xf32> to vector<8x32xf32>
    %274 = vector.extract_strided_slice %271 {offsets = [0, 64], sizes = [8, 32], strides = [1, 1]} : vector<8x128xf32> to vector<8x32xf32>
    %cst_107 = arith.constant 2.000000e+00 : f32
    %275 = vector.broadcast %cst_107 : f32 to vector<8x32xf32>
    %276 = arith.mulf %275, %274 : vector<8x32xf32>
    %cst_108 = arith.constant 1.000000e+00 : f32
    %277 = vector.broadcast %cst_108 : f32 to vector<8x32xf32>
    %278 = arith.subf %276, %277 : vector<8x32xf32>
    %279 = vector.extract_strided_slice %271 {offsets = [0, 96], sizes = [8, 32], strides = [1, 1]} : vector<8x128xf32> to vector<8x32xf32>
    %280 = arith.mulf %273, %253 : vector<8x32xf32>
    %281 = arith.mulf %272, %278 : vector<8x32xf32>
    %282 = arith.addf %280, %281 : vector<8x32xf32>
    %283 = math.tanh %282 : vector<8x32xf32>
    %284 = arith.mulf %279, %283 : vector<8x32xf32>
    %c8 = arith.constant 8 : index
    %c0_109 = arith.constant 0 : index
    %285 = vector.load %arg9[%c8, %c0_109] : memref<48x32xf32, #tpu.memory_space<vmem>>, vector<8x32xf32>
    tpu.vector_store %arg9[%c8, %c0_109], %284 {strides = array<i32>} : memref<48x32xf32, #tpu.memory_space<vmem>>, vector<8x32xf32>,
    %c2_110 = arith.constant 2 : index
    %c0_111 = arith.constant 0 : index
    %286 = memref.load %arg1[%c2_110, %c0_111] : memref<8x2xi32, #tpu.memory_space<smem>>
    %287 = arith.index_cast %286 : i32 to index
    %c0_112 = arith.constant 0 : index
    %288 = vector.load %arg3[%287, %c0_112] : memref<16x128xf32, #tpu.memory_space<vmem>>, vector<1x128xf32>
    %c2_113 = arith.constant 2 : index
    %c1_114 = arith.constant 1 : index
    %289 = memref.load %arg1[%c2_113, %c1_114] : memref<8x2xi32, #tpu.memory_space<smem>>
    %290 = arith.index_cast %289 : i32 to index
    %c0_115 = arith.constant 0 : index
    %291 = vector.load %arg3[%290, %c0_115] : memref<16x128xf32, #tpu.memory_space<vmem>>, vector<1x128xf32>
    %cst_116 = arith.constant 0.000000e+00 : f32
    %292 = vector.broadcast %cst_116 : f32 to vector<6x128xf32>
    %293 = tpu.concatenate %288, %291, %292 in 0 : vector<1x128xf32>, vector<1x128xf32>, vector<6x128xf32> -> vector<8x128xf32>
    %cst_117 = arith.constant dense<0.000000e+00> : vector<8x128xf32>
    %294 = tpu.matmul %284, %227, %cst_117 {dimension_numbers = #tpu.dot_dimension_numbers<[1], [0], [0], [1], [0, 0, 1, 1], [], []>} : vector<8x32xf32>, vector<32x128xf32>, vector<8x128xf32> -> vector<8x128xf32>
    %295 = arith.addf %293, %294 : vector<8x128xf32>
    %296 = arith.negf %295 : vector<8x128xf32>
    %297 = math.exp %296 : vector<8x128xf32>
    %cst_118 = arith.constant 1.000000e+00 : f32
    %298 = vector.broadcast %cst_118 : f32 to vector<8x128xf32>
    %299 = arith.addf %298, %297 : vector<8x128xf32>
    %300 = arith.divf %298, %299 : vector<8x128xf32>
    %301 = vector.extract_strided_slice %300 {offsets = [0, 0], sizes = [8, 32], strides = [1, 1]} : vector<8x128xf32> to vector<8x32xf32>
    %302 = vector.extract_strided_slice %300 {offsets = [0, 32], sizes = [8, 32], strides = [1, 1]} : vector<8x128xf32> to vector<8x32xf32>
    %303 = vector.extract_strided_slice %300 {offsets = [0, 64], sizes = [8, 32], strides = [1, 1]} : vector<8x128xf32> to vector<8x32xf32>
    %cst_119 = arith.constant 2.000000e+00 : f32
    %304 = vector.broadcast %cst_119 : f32 to vector<8x32xf32>
    %305 = arith.mulf %304, %303 : vector<8x32xf32>
    %cst_120 = arith.constant 1.000000e+00 : f32
    %306 = vector.broadcast %cst_120 : f32 to vector<8x32xf32>
    %307 = arith.subf %305, %306 : vector<8x32xf32>
    %308 = vector.extract_strided_slice %300 {offsets = [0, 96], sizes = [8, 32], strides = [1, 1]} : vector<8x128xf32> to vector<8x32xf32>
    %309 = arith.mulf %302, %282 : vector<8x32xf32>
    %310 = arith.mulf %301, %307 : vector<8x32xf32>
    %311 = arith.addf %309, %310 : vector<8x32xf32>
    %312 = math.tanh %311 : vector<8x32xf32>
    %313 = arith.mulf %308, %312 : vector<8x32xf32>
    %c16 = arith.constant 16 : index
    %c0_121 = arith.constant 0 : index
    %314 = vector.load %arg9[%c16, %c0_121] : memref<48x32xf32, #tpu.memory_space<vmem>>, vector<8x32xf32>
    tpu.vector_store %arg9[%c16, %c0_121], %313 {strides = array<i32>} : memref<48x32xf32, #tpu.memory_space<vmem>>, vector<8x32xf32>,
    %c3_122 = arith.constant 3 : index
    %c0_123 = arith.constant 0 : index
    %315 = memref.load %arg1[%c3_122, %c0_123] : memref<8x2xi32, #tpu.memory_space<smem>>
    %316 = arith.index_cast %315 : i32 to index
    %c0_124 = arith.constant 0 : index
    %317 = vector.load %arg3[%316, %c0_124] : memref<16x128xf32, #tpu.memory_space<vmem>>, vector<1x128xf32>
    %c3_125 = arith.constant 3 : index
    %c1_126 = arith.constant 1 : index
    %318 = memref.load %arg1[%c3_125, %c1_126] : memref<8x2xi32, #tpu.memory_space<smem>>
    %319 = arith.index_cast %318 : i32 to index
    %c0_127 = arith.constant 0 : index
    %320 = vector.load %arg3[%319, %c0_127] : memref<16x128xf32, #tpu.memory_space<vmem>>, vector<1x128xf32>
    %cst_128 = arith.constant 0.000000e+00 : f32
    %321 = vector.broadcast %cst_128 : f32 to vector<6x128xf32>
    %322 = tpu.concatenate %317, %320, %321 in 0 : vector<1x128xf32>, vector<1x128xf32>, vector<6x128xf32> -> vector<8x128xf32>
    %cst_129 = arith.constant dense<0.000000e+00> : vector<8x128xf32>
    %323 = tpu.matmul %313, %227, %cst_129 {dimension_numbers = #tpu.dot_dimension_numbers<[1], [0], [0], [1], [0, 0, 1, 1], [], []>} : vector<8x32xf32>, vector<32x128xf32>, vector<8x128xf32> -> vector<8x128xf32>
    %324 = arith.addf %322, %323 : vector<8x128xf32>
    %325 = arith.negf %324 : vector<8x128xf32>
    %326 = math.exp %325 : vector<8x128xf32>
    %cst_130 = arith.constant 1.000000e+00 : f32
    %327 = vector.broadcast %cst_130 : f32 to vector<8x128xf32>
    %328 = arith.addf %327, %326 : vector<8x128xf32>
    %329 = arith.divf %327, %328 : vector<8x128xf32>
    %330 = vector.extract_strided_slice %329 {offsets = [0, 0], sizes = [8, 32], strides = [1, 1]} : vector<8x128xf32> to vector<8x32xf32>
    %331 = vector.extract_strided_slice %329 {offsets = [0, 32], sizes = [8, 32], strides = [1, 1]} : vector<8x128xf32> to vector<8x32xf32>
    %332 = vector.extract_strided_slice %329 {offsets = [0, 64], sizes = [8, 32], strides = [1, 1]} : vector<8x128xf32> to vector<8x32xf32>
    %cst_131 = arith.constant 2.000000e+00 : f32
    %333 = vector.broadcast %cst_131 : f32 to vector<8x32xf32>
    %334 = arith.mulf %333, %332 : vector<8x32xf32>
    %cst_132 = arith.constant 1.000000e+00 : f32
    %335 = vector.broadcast %cst_132 : f32 to vector<8x32xf32>
    %336 = arith.subf %334, %335 : vector<8x32xf32>
    %337 = vector.extract_strided_slice %329 {offsets = [0, 96], sizes = [8, 32], strides = [1, 1]} : vector<8x128xf32> to vector<8x32xf32>
    %338 = arith.mulf %331, %311 : vector<8x32xf32>
    %339 = arith.mulf %330, %336 : vector<8x32xf32>
    %340 = arith.addf %338, %339 : vector<8x32xf32>
    %341 = math.tanh %340 : vector<8x32xf32>
    %342 = arith.mulf %337, %341 : vector<8x32xf32>
    %c24 = arith.constant 24 : index
    %c0_133 = arith.constant 0 : index
    %343 = vector.load %arg9[%c24, %c0_133] : memref<48x32xf32, #tpu.memory_space<vmem>>, vector<8x32xf32>
    tpu.vector_store %arg9[%c24, %c0_133], %342 {strides = array<i32>} : memref<48x32xf32, #tpu.memory_space<vmem>>, vector<8x32xf32>,
    %c4_134 = arith.constant 4 : index
    %c0_135 = arith.constant 0 : index
    %344 = memref.load %arg1[%c4_134, %c0_135] : memref<8x2xi32, #tpu.memory_space<smem>>
    %345 = arith.index_cast %344 : i32 to index
    %c0_136 = arith.constant 0 : index
    %346 = vector.load %arg3[%345, %c0_136] : memref<16x128xf32, #tpu.memory_space<vmem>>, vector<1x128xf32>
    %c4_137 = arith.constant 4 : index
    %c1_138 = arith.constant 1 : index
    %347 = memref.load %arg1[%c4_137, %c1_138] : memref<8x2xi32, #tpu.memory_space<smem>>
    %348 = arith.index_cast %347 : i32 to index
    %c0_139 = arith.constant 0 : index
    %349 = vector.load %arg3[%348, %c0_139] : memref<16x128xf32, #tpu.memory_space<vmem>>, vector<1x128xf32>
    %cst_140 = arith.constant 0.000000e+00 : f32
    %350 = vector.broadcast %cst_140 : f32 to vector<6x128xf32>
    %351 = tpu.concatenate %346, %349, %350 in 0 : vector<1x128xf32>, vector<1x128xf32>, vector<6x128xf32> -> vector<8x128xf32>
    %cst_141 = arith.constant dense<0.000000e+00> : vector<8x128xf32>
    %352 = tpu.matmul %342, %227, %cst_141 {dimension_numbers = #tpu.dot_dimension_numbers<[1], [0], [0], [1], [0, 0, 1, 1], [], []>} : vector<8x32xf32>, vector<32x128xf32>, vector<8x128xf32> -> vector<8x128xf32>
    %353 = arith.addf %351, %352 : vector<8x128xf32>
    %354 = arith.negf %353 : vector<8x128xf32>
    %355 = math.exp %354 : vector<8x128xf32>
    %cst_142 = arith.constant 1.000000e+00 : f32
    %356 = vector.broadcast %cst_142 : f32 to vector<8x128xf32>
    %357 = arith.addf %356, %355 : vector<8x128xf32>
    %358 = arith.divf %356, %357 : vector<8x128xf32>
    %359 = vector.extract_strided_slice %358 {offsets = [0, 0], sizes = [8, 32], strides = [1, 1]} : vector<8x128xf32> to vector<8x32xf32>
    %360 = vector.extract_strided_slice %358 {offsets = [0, 32], sizes = [8, 32], strides = [1, 1]} : vector<8x128xf32> to vector<8x32xf32>
    %361 = vector.extract_strided_slice %358 {offsets = [0, 64], sizes = [8, 32], strides = [1, 1]} : vector<8x128xf32> to vector<8x32xf32>
    %cst_143 = arith.constant 2.000000e+00 : f32
    %362 = vector.broadcast %cst_143 : f32 to vector<8x32xf32>
    %363 = arith.mulf %362, %361 : vector<8x32xf32>
    %cst_144 = arith.constant 1.000000e+00 : f32
    %364 = vector.broadcast %cst_144 : f32 to vector<8x32xf32>
    %365 = arith.subf %363, %364 : vector<8x32xf32>
    %366 = vector.extract_strided_slice %358 {offsets = [0, 96], sizes = [8, 32], strides = [1, 1]} : vector<8x128xf32> to vector<8x32xf32>
    %367 = arith.mulf %360, %340 : vector<8x32xf32>
    %368 = arith.mulf %359, %365 : vector<8x32xf32>
    %369 = arith.addf %367, %368 : vector<8x32xf32>
    %370 = math.tanh %369 : vector<8x32xf32>
    %371 = arith.mulf %366, %370 : vector<8x32xf32>
    %c32 = arith.constant 32 : index
    %c0_145 = arith.constant 0 : index
    %372 = vector.load %arg9[%c32, %c0_145] : memref<48x32xf32, #tpu.memory_space<vmem>>, vector<8x32xf32>
    tpu.vector_store %arg9[%c32, %c0_145], %371 {strides = array<i32>} : memref<48x32xf32, #tpu.memory_space<vmem>>, vector<8x32xf32>,
    %c5_146 = arith.constant 5 : index
    %c0_147 = arith.constant 0 : index
    %373 = memref.load %arg1[%c5_146, %c0_147] : memref<8x2xi32, #tpu.memory_space<smem>>
    %374 = arith.index_cast %373 : i32 to index
    %c0_148 = arith.constant 0 : index
    %375 = vector.load %arg3[%374, %c0_148] : memref<16x128xf32, #tpu.memory_space<vmem>>, vector<1x128xf32>
    %c5_149 = arith.constant 5 : index
    %c1_150 = arith.constant 1 : index
    %376 = memref.load %arg1[%c5_149, %c1_150] : memref<8x2xi32, #tpu.memory_space<smem>>
    %377 = arith.index_cast %376 : i32 to index
    %c0_151 = arith.constant 0 : index
    %378 = vector.load %arg3[%377, %c0_151] : memref<16x128xf32, #tpu.memory_space<vmem>>, vector<1x128xf32>
    %cst_152 = arith.constant 0.000000e+00 : f32
    %379 = vector.broadcast %cst_152 : f32 to vector<6x128xf32>
    %380 = tpu.concatenate %375, %378, %379 in 0 : vector<1x128xf32>, vector<1x128xf32>, vector<6x128xf32> -> vector<8x128xf32>
    %cst_153 = arith.constant dense<0.000000e+00> : vector<8x128xf32>
    %381 = tpu.matmul %371, %227, %cst_153 {dimension_numbers = #tpu.dot_dimension_numbers<[1], [0], [0], [1], [0, 0, 1, 1], [], []>} : vector<8x32xf32>, vector<32x128xf32>, vector<8x128xf32> -> vector<8x128xf32>
    %382 = arith.addf %380, %381 : vector<8x128xf32>
    %383 = arith.negf %382 : vector<8x128xf32>
    %384 = math.exp %383 : vector<8x128xf32>
    %cst_154 = arith.constant 1.000000e+00 : f32
    %385 = vector.broadcast %cst_154 : f32 to vector<8x128xf32>
    %386 = arith.addf %385, %384 : vector<8x128xf32>
    %387 = arith.divf %385, %386 : vector<8x128xf32>
    %388 = vector.extract_strided_slice %387 {offsets = [0, 0], sizes = [8, 32], strides = [1, 1]} : vector<8x128xf32> to vector<8x32xf32>
    %389 = vector.extract_strided_slice %387 {offsets = [0, 32], sizes = [8, 32], strides = [1, 1]} : vector<8x128xf32> to vector<8x32xf32>
    %390 = vector.extract_strided_slice %387 {offsets = [0, 64], sizes = [8, 32], strides = [1, 1]} : vector<8x128xf32> to vector<8x32xf32>
    %cst_155 = arith.constant 2.000000e+00 : f32
    %391 = vector.broadcast %cst_155 : f32 to vector<8x32xf32>
    %392 = arith.mulf %391, %390 : vector<8x32xf32>
    %cst_156 = arith.constant 1.000000e+00 : f32
    %393 = vector.broadcast %cst_156 : f32 to vector<8x32xf32>
    %394 = arith.subf %392, %393 : vector<8x32xf32>
    %395 = vector.extract_strided_slice %387 {offsets = [0, 96], sizes = [8, 32], strides = [1, 1]} : vector<8x128xf32> to vector<8x32xf32>
    %396 = arith.mulf %389, %369 : vector<8x32xf32>
    %397 = arith.mulf %388, %394 : vector<8x32xf32>
    %398 = arith.addf %396, %397 : vector<8x32xf32>
    %399 = math.tanh %398 : vector<8x32xf32>
    %400 = arith.mulf %395, %399 : vector<8x32xf32>
    %c40 = arith.constant 40 : index
    %c0_157 = arith.constant 0 : index
    %401 = vector.load %arg9[%c40, %c0_157] : memref<48x32xf32, #tpu.memory_space<vmem>>, vector<8x32xf32>
    tpu.vector_store %arg9[%c40, %c0_157], %400 {strides = array<i32>} : memref<48x32xf32, #tpu.memory_space<vmem>>, vector<8x32xf32>,
    %c0_158 = arith.constant 0 : index
    %c0_159 = arith.constant 0 : index
    %402 = vector.load %arg9[%c0_158, %c0_159] : memref<48x32xf32, #tpu.memory_space<vmem>>, vector<48x32xf32>
    %c0_160 = arith.constant 0 : index
    %c0_161 = arith.constant 0 : index
    %403 = vector.load %arg6[%c0_160, %c0_161] : memref<32x128xf32, #tpu.memory_space<vmem>>, vector<32x128xf32>
    %cst_162 = arith.constant dense<0.000000e+00> : vector<48x128xf32>
    %404 = tpu.matmul %402, %403, %cst_162 {dimension_numbers = #tpu.dot_dimension_numbers<[1], [0], [0], [1], [0, 0, 1, 1], [], []>} : vector<48x32xf32>, vector<32x128xf32>, vector<48x128xf32> -> vector<48x128xf32>
    %c0_163 = arith.constant 0 : index
    %c0_164 = arith.constant 0 : index
    %405 = vector.load %arg7[%c0_163, %c0_164] : memref<1x128xf32, #tpu.memory_space<vmem>>, vector<1x128xf32>
    %406 = vector.broadcast %405 : vector<1x128xf32> to vector<48x128xf32>
    %407 = arith.addf %404, %406 : vector<48x128xf32>
    %408 = vector.shape_cast %407 : vector<48x128xf32> to vector<6x8x128xf32>
    %c1_165 = arith.constant 1 : index
    %c0_166 = arith.constant 0 : index
    %c0_167 = arith.constant 0 : index
    %409 = vector.load %arg8[%c1_165, %c0_166, %c0_167] : memref<8x8x128xf32, #tpu.memory_space<vmem>>, vector<6x8x128xf32>
    tpu.vector_store %arg8[%c1_165, %c0_166, %c0_167], %408 {strides = array<i32>} : memref<8x8x128xf32, #tpu.memory_space<vmem>>, vector<6x8x128xf32>,
    %410 = tpu.iota {dimensions = array<i32: 0>} : vector<8x128xi32>
    %411 = tpu.iota {dimensions = array<i32: 1>} : vector<8x128xi32>
    %c0_i32 = arith.constant 0 : i32
    %412 = vector.broadcast %c0_i32 : i32 to vector<8x128xi32>
    %413 = arith.cmpi eq, %410, %412 : vector<8x128xi32>
    %c0_i32_168 = arith.constant 0 : i32
    %414 = vector.broadcast %c0_i32_168 : i32 to vector<8x128xi32>
    %415 = arith.cmpi eq, %411, %414 : vector<8x128xi32>
    %416 = arith.andi %413, %415 : vector<8x128xi1>
    %cst_169 = arith.constant 1.000000e+00 : f32
    %cst_170 = arith.constant 0.000000e+00 : f32
    %417 = vector.broadcast %cst_169 : f32 to vector<8x128xf32>
    %418 = vector.broadcast %cst_170 : f32 to vector<8x128xf32>
    %419 = arith.select %416, %417, %418 : vector<8x128xi1>, vector<8x128xf32>
    %c0_171 = arith.constant 0 : index
    %c0_172 = arith.constant 0 : index
    %c0_173 = arith.constant 0 : index
    %420 = vector.load %arg8[%c0_171, %c0_172, %c0_173] : memref<8x8x128xf32, #tpu.memory_space<vmem>>, vector<1x8x128xf32>
    %421 = vector.shape_cast %420 : vector<1x8x128xf32> to vector<8x128xf32>
    %422 = vector.shape_cast %419 : vector<8x128xf32> to vector<1x8x128xf32>
    tpu.vector_store %arg8[%c0_171, %c0_172, %c0_173], %422 {strides = array<i32>} : memref<8x8x128xf32, #tpu.memory_space<vmem>>, vector<1x8x128xf32>,
    %cst_174 = arith.constant 0.000000e+00 : f32
    %423 = vector.broadcast %cst_174 : f32 to vector<8x128xf32>
    %c7_175 = arith.constant 7 : index
    %c0_176 = arith.constant 0 : index
    %c0_177 = arith.constant 0 : index
    %424 = vector.load %arg8[%c7_175, %c0_176, %c0_177] : memref<8x8x128xf32, #tpu.memory_space<vmem>>, vector<1x8x128xf32>
    %425 = vector.shape_cast %424 : vector<1x8x128xf32> to vector<8x128xf32>
    %426 = vector.shape_cast %423 : vector<8x128xf32> to vector<1x8x128xf32>
    tpu.vector_store %arg8[%c7_175, %c0_176, %c0_177], %426 {strides = array<i32>} : memref<8x8x128xf32, #tpu.memory_space<vmem>>, vector<1x8x128xf32>,
    return
  }
}

</mosaic_0001>

<llo_original>
// kernel: seq2seq_forward.1
$region0: #{seq2seq_forward.1}
  #allocation0 [shape = 'u32[]', space=smem, size = 0x4, offset = 0x4, fixed_abs, tag = 'smem constant byte address 0x4 - core index']
  #allocation1 [shape = 'u32[144,128]{1,0:T(1,128)}', space=vmem, size = 0x12000, scoped, tag = 'internal scratch']
  #allocation2 [shape = 'f32[48,32]{1,0:T(8,128)}', space=vmem, size = 0x6000, scoped, tag = 'scratch operand']
  %s0 = inlined_call_operand.vmem [shape: s32[8,2], index: 0, kind: input, shape index: {}]
  %s1 = inlined_call_operand.vmem [shape: s32[8,2], index: 1, kind: input, shape index: {}]
  %s2 = inlined_call_operand.hbm [shape: f32[24,128], index: 2, kind: input, shape index: {}]
  %s3 = inlined_call_operand.vmem [shape: f32[16,128], index: 3, kind: input, shape index: {}]
  %s4 = inlined_call_operand.hbm [shape: f32[32,128], index: 4, kind: input, shape index: {}]
  %s5 = inlined_call_operand.hbm [shape: f32[32,128], index: 5, kind: input, shape index: {}]
  %s6 = inlined_call_operand.hbm [shape: f32[32,128], index: 6, kind: input, shape index: {}]
  %s7 = inlined_call_operand.vmem [shape: f32[1,128], index: 7, kind: input, shape index: {}]
  %s8 = inlined_call_operand.vmem [shape: f32[8,8,128], index: 8, kind: output, shape index: {}]
  %s9 = sld [smem:[#allocation0]]
  $region66: #{seq2seq_forward.1} parent=0
    _
  %s11 = ssub.s32 1, %s9
  %s12 = scalar_select 0, %s11, %s9
  $region1: #{seq2seq_forward.1} parent=0
    #allocation3 [shape = 'u8[4096]{0}', space=smem, size = 0x1000, scoped, tag = 'input window, operand 0, single buffered']
    #allocation4 [shape = 's32[1]{0}', space=sflag, size = 0x4, scoped, tag = 'scoped memory for seq2seq_forward.1']
    #allocation5 [shape = 's32[1]{0}', space=sflag, size = 0x4, scoped, tag = 'scoped memory for seq2seq_forward.1']
    #allocation6 [shape = 'u8[4096]{0}', space=smem, size = 0x1000, scoped, tag = 'input window, operand 1, single buffered']
    #allocation7 [shape = 's32[1]{0}', space=sflag, size = 0x4, scoped, tag = 'scoped memory for seq2seq_forward.1']
    #allocation8 [shape = 'u8[12288]{0}', space=vmem, size = 0x3000, scoped, tag = 'input window, operand 2, single buffered']
    #allocation9 [shape = 'u8[16384]{0}', space=vmem, size = 0x4000, scoped, tag = 'input window, operand 4, single buffered']
    #allocation10 [shape = 's32[1]{0}', space=sflag, size = 0x4, scoped, tag = 'scoped memory for seq2seq_forward.1']
    #allocation11 [shape = 'u8[16384]{0}', space=vmem, size = 0x4000, scoped, tag = 'input window, operand 5, single buffered']
    #allocation12 [shape = 'u8[16384]{0}', space=vmem, size = 0x4000, scoped, tag = 'input window, operand 6, single buffered']
    #allocation13 [shape = 's32[1]{0}', space=sflag, size = 0x4, scoped, tag = 'scoped memory for seq2seq_forward.1']
    %13 = vsyncpa [#allocation5], 0
    %14 = vsyncpa [#allocation7], 0
    %15 = vsyncpa [#allocation4], 0
    %16 = vsyncpa [#allocation10], 0
    %17 = vsyncpa [#allocation13], 0
    // Predicated region
    $region2: #{seq2seq_forward.1} parent=1 // pred_check
      _
    $region3: #{seq2seq_forward.1} parent=1 // pred_check_branch
      %19 = sbr.rel (0) target = $region5
    $region4: #{seq2seq_forward.1} parent=1 // pred_region
      %s21 = ssub.s32 128, 128
      %22 = vsyncadd [#allocation5], %s21
      %s24 = sshll.u32 %s0, 4
      %s25 = int_to_ptr.vmem [resolvable:$true] %s24
      %27 = dma.vmem_to_smem %s25, 128, [#allocation3], [#allocation5]
    $region5: #{seq2seq_forward.1} parent=1 // pred_fallthru
      _
    // Predicated region
    $region6: #{seq2seq_forward.1} parent=1 // pred_check
      _
    $region7: #{seq2seq_forward.1} parent=1 // pred_check_branch
      %29 = sbr.rel (0) target = $region9
    $region8: #{seq2seq_forward.1} parent=1 // pred_region
      %s31 = ssub.s32 128, 128
      %32 = vsyncadd [#allocation7], %s31
      %s34 = sshll.u32 %s1, 4
      %s35 = int_to_ptr.vmem [resolvable:$true] %s34
      %37 = dma.vmem_to_smem %s35, 128, [#allocation6], [#allocation7]
    $region9: #{seq2seq_forward.1} parent=1 // pred_fallthru
      _
    // Predicated region
    $region10: #{seq2seq_forward.1} parent=1 // pred_check
      _
    $region11: #{seq2seq_forward.1} parent=1 // pred_check_branch
      %39 = sbr.rel (0) target = $region13
    $region12: #{seq2seq_forward.1} parent=1 // pred_region
      %s41 = ssub.s32 384, 384
      %42 = vsyncadd [#allocation4], %s41
      %s43 = sshll.u32 [#allocation8], 4
      %s44 = int_to_ptr.vmem [resolvable:$true] %s43
      %49 = dma.hbm_to_vmem [thread:$0]  %s2, 384, %s44, [#allocation4], 128, 128, 8
    $region13: #{seq2seq_forward.1} parent=1 // pred_fallthru
      _
    // Predicated region
    $region14: #{seq2seq_forward.1} parent=1 // pred_check
      _
    $region15: #{seq2seq_forward.1} parent=1 // pred_check_branch
      %51 = sbr.rel (0) target = $region17
    $region16: #{seq2seq_forward.1} parent=1 // pred_region
      _
    $region17: #{seq2seq_forward.1} parent=1 // pred_fallthru
      _
    // Predicated region
    $region18: #{seq2seq_forward.1} parent=1 // pred_check
      _
    $region19: #{seq2seq_forward.1} parent=1 // pred_check_branch
      %53 = sbr.rel (0) target = $region21
    $region20: #{seq2seq_forward.1} parent=1 // pred_region
      %s55 = ssub.s32 512, 512
      %56 = vsyncadd [#allocation10], %s55
      %s57 = sshll.u32 [#allocation9], 4
      %s58 = int_to_ptr.vmem [resolvable:$true] %s57
      %63 = dma.hbm_to_vmem [thread:$0]  %s4, 512, %s58, [#allocation10], 128, 128, 8
    $region21: #{seq2seq_forward.1} parent=1 // pred_fallthru
      _
    // Predicated region
    $region22: #{seq2seq_forward.1} parent=1 // pred_check
      _
    $region23: #{seq2seq_forward.1} parent=1 // pred_check_branch
      %65 = sbr.rel (0) target = $region25
    $region24: #{seq2seq_forward.1} parent=1 // pred_region
      %s67 = ssub.s32 512, 512
      %68 = vsyncadd [#allocation10], %s67
      %s69 = sshll.u32 [#allocation11], 4
      %s70 = int_to_ptr.vmem [resolvable:$true] %s69
      %75 = dma.hbm_to_vmem [thread:$0]  %s5, 512, %s70, [#allocation10], 128, 128, 8
    $region25: #{seq2seq_forward.1} parent=1 // pred_fallthru
      _
    // Predicated region
    $region26: #{seq2seq_forward.1} parent=1 // pred_check
      _
    $region27: #{seq2seq_forward.1} parent=1 // pred_check_branch
      %77 = sbr.rel (0) target = $region29
    $region28: #{seq2seq_forward.1} parent=1 // pred_region
      %s79 = ssub.s32 512, 512
      %80 = vsyncadd [#allocation13], %s79
      %s81 = sshll.u32 [#allocation12], 4
      %s82 = int_to_ptr.vmem [resolvable:$true] %s81
      %87 = dma.hbm_to_vmem [thread:$0]  %s6, 512, %s82, [#allocation13], 128, 128, 8
    $region29: #{seq2seq_forward.1} parent=1 // pred_fallthru
      _
    // Predicated region
    $region30: #{seq2seq_forward.1} parent=1 // pred_check
      _
    $region31: #{seq2seq_forward.1} parent=1 // pred_check_branch
      %89 = sbr.rel (0) target = $region33
    $region32: #{seq2seq_forward.1} parent=1 // pred_region
      _
    $region33: #{seq2seq_forward.1} parent=1 // pred_fallthru
      _
    // Predicated region
    $region34: #{seq2seq_forward.1} parent=1 // pred_check
      _
    $region35: #{seq2seq_forward.1} parent=1 // pred_check_branch
      %91 = sbr.rel (0) target = $region37
    $region36: #{seq2seq_forward.1} parent=1 // pred_region
      %92 = dma.done [#allocation5], 128
    $region37: #{seq2seq_forward.1} parent=1 // pred_fallthru
      _
    // Predicated region
    $region38: #{seq2seq_forward.1} parent=1 // pred_check
      _
    $region39: #{seq2seq_forward.1} parent=1 // pred_check_branch
      %94 = sbr.rel (0) target = $region41
    $region40: #{seq2seq_forward.1} parent=1 // pred_region
      %95 = dma.done [#allocation7], 128
    $region41: #{seq2seq_forward.1} parent=1 // pred_fallthru
      _
    // Predicated region
    $region42: #{seq2seq_forward.1} parent=1 // pred_check
      _
    $region43: #{seq2seq_forward.1} parent=1 // pred_check_branch
      %97 = sbr.rel (0) target = $region45
    $region44: #{seq2seq_forward.1} parent=1 // pred_region
      %98 = dma.done [#allocation4], 384
    $region45: #{seq2seq_forward.1} parent=1 // pred_fallthru
      _
    // Predicated region
    $region46: #{seq2seq_forward.1} parent=1 // pred_check
      _
    $region47: #{seq2seq_forward.1} parent=1 // pred_check_branch
      %100 = sbr.rel (0) target = $region49
    $region48: #{seq2seq_forward.1} parent=1 // pred_region
      %101 = dma.done [#allocation10], 512
    $region49: #{seq2seq_forward.1} parent=1 // pred_fallthru
      _
    // Predicated region
    $region50: #{seq2seq_forward.1} parent=1 // pred_check
      _
    $region51: #{seq2seq_forward.1} parent=1 // pred_check_branch
      %103 = sbr.rel (0) target = $region53
    $region52: #{seq2seq_forward.1} parent=1 // pred_region
      %104 = dma.done [#allocation10], 512
    $region53: #{seq2seq_forward.1} parent=1 // pred_fallthru
      _
    // Predicated region
    $region54: #{seq2seq_forward.1} parent=1 // pred_check
      _
    $region55: #{seq2seq_forward.1} parent=1 // pred_check_branch
      %106 = sbr.rel (0) target = $region57
    $region56: #{seq2seq_forward.1} parent=1 // pred_region
      %107 = dma.done [#allocation13], 512
    $region57: #{seq2seq_forward.1} parent=1 // pred_fallthru
      _
    %108 = sfence
    %v109 = vld [vmem:[#allocation9] sm:$0xff]
    %v110 = vld [vmem:[#allocation9 + $0x8] sm:$0xff]
    %v111 = vld [vmem:[#allocation9 + $0x10] sm:$0xff]
    %v112 = vld [vmem:[#allocation9 + $0x18] sm:$0xff]
    %s113 = sld [smem:[#allocation3]]
    %s114 = scalar_lea.vmem [#allocation8], %s113
    %v115 = vld [vmem:[%s114] sm:$0x1]
    %s116 = sld [smem:[#allocation3 + $0x1]]
    %s117 = scalar_lea.vmem [#allocation8], %s116
    %v118 = vld [vmem:[%s117] sm:$0x1]
    %v120 = vrot.slane %v118, 7
    %vm122 = vcmask 1040384
    %v123 = vsel %vm122, %v115, %v120
    %vm124 = vcmask 1041408
    %v125 = vsel %vm124, %v123, 0.0
    %vm126 = vcmask 261120
    %v128 = vsel %vm126, 0.0, 0
    %130 = vmatprep.subr.mxu0 0.0
    %131 = vmatpush1.msra.mxu0 0.0
    %132 = vmatprep.subr.mxu0 0.0
    %133 = vmatpush1.msra.mxu0 0.0
    %134 = vmatprep.subr.mxu0 0.0
    %135 = vmatpush1.msra.mxu0 0.0
    %136 = vmatprep.subr.mxu0 0.0
    %137 = vmatpush1.msra.mxu0 0.0
    %138 = vmatprep.subr.mxu0 0.0
    %139 = vmatpush1.msra.mxu0 0.0
    %140 = vmatprep.subr.mxu0 0.0
    %141 = vmatpush1.msra.mxu0 0.0
    %142 = vmatprep.subr.mxu0 0.0
    %143 = vmatpush1.msra.mxu0 0.0
    %144 = vmatprep.subr.mxu0 0.0
    %145 = vmatpush1.msra.mxu0 0.0
    %146 = vmatprep.subr.mxu0 0.0
    %147 = vmatpush1.msra.mxu0 0.0
    %148 = vmatprep.subr.mxu0 0.0
    %149 = vmatpush1.msra.mxu0 0.0
    %150 = vmatprep.subr.mxu0 0.0
    %151 = vmatpush1.msra.mxu0 0.0
    %152 = vmatprep.subr.mxu0 0.0
    %153 = vmatpush1.msra.mxu0 0.0
    %154 = vmatprep.subr.mxu0 0.0
    %155 = vmatpush1.msra.mxu0 %v112
    %156 = vmatprep.subr.mxu0 0.0
    %157 = vmatpush1.msra.mxu0 %v111
    %158 = vmatprep.subr.mxu0 0.0
    %159 = vmatpush1.msra.mxu0 %v110
    %160 = vmatprep.subr.mxu0 0.0
    %161 = vmatpush1.msra.mxu0 %v109
    %162 = vmatprep.subr.mxu0 0.0
    %163 = vmatpush2.msra.mxu0 0.0
    %164 = vmatprep.subr.mxu0 0.0
    %165 = vmatpush2.msra.mxu0 0.0
    %166 = vmatprep.subr.mxu0 0.0
    %167 = vmatpush2.msra.mxu0 0.0
    %168 = vmatprep.subr.mxu0 0.0
    %169 = vmatpush2.msra.mxu0 0.0
    %170 = vmatprep.subr.mxu0 0.0
    %171 = vmatpush2.msra.mxu0 0.0
    %172 = vmatprep.subr.mxu0 0.0
    %173 = vmatpush2.msra.mxu0 0.0
    %174 = vmatprep.subr.mxu0 0.0
    %175 = vmatpush2.msra.mxu0 0.0
    %176 = vmatprep.subr.mxu0 0.0
    %177 = vmatpush2.msra.mxu0 0.0
    %178 = vmatprep.subr.mxu0 0.0
    %179 = vmatpush2.msra.mxu0 0.0
    %180 = vmatprep.subr.mxu0 0.0
    %181 = vmatpush2.msra.mxu0 0.0
    %182 = vmatprep.subr.mxu0 0.0
    %183 = vmatpush2.msra.mxu0 0.0
    %184 = vmatprep.subr.mxu0 0.0
    %185 = vmatpush2.msra.mxu0 0.0
    %186 = vmatprep.subr.mxu0 0.0
    %187 = vmatpush2.msra.mxu0 0.0
    %188 = vmatprep.subr.mxu0 0.0
    %189 = vmatpush2.msra.mxu0 0.0
    %190 = vmatprep.subr.mxu0 0.0
    %191 = vmatpush2.msra.mxu0 0.0
    %192 = vmatprep.subr.mxu0 0.0
    %193 = vmatpush2.msra.mxu0 0.0
    %194 = vmatprep.mubr.f32.mxu0 0.0
    %195 = vmatmul.mubr.f32.gmra.mxu0 %v128
    %v196 = vpop.f32.mrf.mxu0
    %v197 = vadd.f32 0.0, %v196
    %v198 = vpop.f32.mrf.mxu0
    %199 = vdwg.mxu0
    %v200 = vadd.f32 %v125, %v197
    %v201 = vxor.u32 %v200, 2147483648
    %v202 = vmul.f32 %v201, 1.442695
    %v203 = vpow.pop %v202
    %v204 = vadd.f32 %v203, 1.0
    %v205 = vrcp.pop %v204
    %v206 = vmul.f32 1.0, %v205
    %v207 = vmul.f32 %v206, 2.0
    %v208 = vsub.f32 %v207, 1.0
    %v209 = vmul.f32 %v206, 0.0
    %211 = vrot.lane.b32.xlu0 %v208, 64
    %v212 = vpop.permute.xlu0 %211
    %v214 = vmul.f32 %v206, %v212
    %216 = vrot.lane.b32.xlu0 %v214, 32
    %v217 = vpop.permute.xlu0 %216
    %v219 = vadd.f32 %v209, %v217
    %v220 = vtanh.pop %v219
    %222 = vrot.lane.b32.xlu0 %v220, 64
    %v223 = vpop.permute.xlu0 %222
    %v225 = vmul.f32 %v206, %v223
    %s226 = sld [smem:[#allocation3 + $0x80]]
    %s227 = scalar_lea.vmem [#allocation8], %s226
    %v228 = vld [vmem:[%s227] sm:$0x1]
    %s229 = sld [smem:[#allocation3 + $0x81]]
    %s230 = scalar_lea.vmem [#allocation8], %s229
    %v231 = vld [vmem:[%s230] sm:$0x1]
    %v233 = vrot.slane %v231, 7
    %v235 = vsel %vm122, %v228, %v233
    %v236 = vsel %vm124, %v235, 0.0
    %238 = vrot.lane.b32.xlu0 %v225, 32
    %v239 = vpop.permute.xlu0 %238
    %v240 = vsel %vm126, %v239, 0
    %242 = vmatprep.subr.mxu0 0.0
    %243 = vmatpush1.msra.mxu0 0.0
    %244 = vmatprep.subr.mxu0 0.0
    %245 = vmatpush1.msra.mxu0 0.0
    %246 = vmatprep.subr.mxu0 0.0
    %247 = vmatpush1.msra.mxu0 0.0
    %248 = vmatprep.subr.mxu0 0.0
    %249 = vmatpush1.msra.mxu0 0.0
    %250 = vmatprep.subr.mxu0 0.0
    %251 = vmatpush1.msra.mxu0 0.0
    %252 = vmatprep.subr.mxu0 0.0
    %253 = vmatpush1.msra.mxu0 0.0
    %254 = vmatprep.subr.mxu0 0.0
    %255 = vmatpush1.msra.mxu0 0.0
    %256 = vmatprep.subr.mxu0 0.0
    %257 = vmatpush1.msra.mxu0 0.0
    %258 = vmatprep.subr.mxu0 0.0
    %259 = vmatpush1.msra.mxu0 0.0
    %260 = vmatprep.subr.mxu0 0.0
    %261 = vmatpush1.msra.mxu0 0.0
    %262 = vmatprep.subr.mxu0 0.0
    %263 = vmatpush1.msra.mxu0 0.0
    %264 = vmatprep.subr.mxu0 0.0
    %265 = vmatpush1.msra.mxu0 0.0
    %266 = vmatprep.subr.mxu0 0.0
    %267 = vmatpush1.msra.mxu0 %v112
    %268 = vmatprep.subr.mxu0 0.0
    %269 = vmatpush1.msra.mxu0 %v111
    %270 = vmatprep.subr.mxu0 0.0
    %271 = vmatpush1.msra.mxu0 %v110
    %272 = vmatprep.subr.mxu0 0.0
    %273 = vmatpush1.msra.mxu0 %v109
    %274 = vmatprep.subr.mxu0 0.0
    %275 = vmatpush2.msra.mxu0 0.0
    %276 = vmatprep.subr.mxu0 0.0
    %277 = vmatpush2.msra.mxu0 0.0
    %278 = vmatprep.subr.mxu0 0.0
    %279 = vmatpush2.msra.mxu0 0.0
    %280 = vmatprep.subr.mxu0 0.0
    %281 = vmatpush2.msra.mxu0 0.0
    %282 = vmatprep.subr.mxu0 0.0
    %283 = vmatpush2.msra.mxu0 0.0
    %284 = vmatprep.subr.mxu0 0.0
    %285 = vmatpush2.msra.mxu0 0.0
    %286 = vmatprep.subr.mxu0 0.0
    %287 = vmatpush2.msra.mxu0 0.0
    %288 = vmatprep.subr.mxu0 0.0
    %289 = vmatpush2.msra.mxu0 0.0
    %290 = vmatprep.subr.mxu0 0.0
    %291 = vmatpush2.msra.mxu0 0.0
    %292 = vmatprep.subr.mxu0 0.0
    %293 = vmatpush2.msra.mxu0 0.0
    %294 = vmatprep.subr.mxu0 0.0
    %295 = vmatpush2.msra.mxu0 0.0
    %296 = vmatprep.subr.mxu0 0.0
    %297 = vmatpush2.msra.mxu0 0.0
    %298 = vmatprep.subr.mxu0 0.0
    %299 = vmatpush2.msra.mxu0 0.0
    %300 = vmatprep.subr.mxu0 0.0
    %301 = vmatpush2.msra.mxu0 0.0
    %302 = vmatprep.subr.mxu0 0.0
    %303 = vmatpush2.msra.mxu0 0.0
    %304 = vmatprep.subr.mxu0 0.0
    %305 = vmatpush2.msra.mxu0 0.0
    %306 = vmatprep.mubr.f32.mxu0 0.0
    %307 = vmatmul.mubr.f32.gmra.mxu0 %v240
    %v308 = vpop.f32.mrf.mxu0
    %v309 = vadd.f32 0.0, %v308
    %v310 = vpop.f32.mrf.mxu0
    %311 = vdwg.mxu0
    %v312 = vadd.f32 %v236, %v309
    %v313 = vxor.u32 %v312, 2147483648
    %v314 = vmul.f32 %v313, 1.442695
    %v315 = vpow.pop %v314
    %v316 = vadd.f32 %v315, 1.0
    %v317 = vrcp.pop %v316
    %v318 = vmul.f32 1.0, %v317
    %v319 = vmul.f32 %v318, 2.0
    %v320 = vsub.f32 %v319, 1.0
    %v321 = vmul.f32 %v318, %v219
    %323 = vrot.lane.b32.xlu0 %v320, 64
    %v324 = vpop.permute.xlu0 %323
    %v326 = vmul.f32 %v318, %v324
    %328 = vrot.lane.b32.xlu0 %v326, 32
    %v329 = vpop.permute.xlu0 %328
    %v331 = vadd.f32 %v321, %v329
    %v332 = vtanh.pop %v331
    %334 = vrot.lane.b32.xlu0 %v332, 64
    %v335 = vpop.permute.xlu0 %334
    %v337 = vmul.f32 %v318, %v335
    %s338 = sld [smem:[#allocation3 + $0x100]]
    %s339 = scalar_lea.vmem [#allocation8], %s338
    %v340 = vld [vmem:[%s339] sm:$0x1]
    %s341 = sld [smem:[#allocation3 + $0x101]]
    %s342 = scalar_lea.vmem [#allocation8], %s341
    %v343 = vld [vmem:[%s342] sm:$0x1]
    %v345 = vrot.slane %v343, 7
    %v347 = vsel %vm122, %v340, %v345
    %v348 = vsel %vm124, %v347, 0.0
    %350 = vrot.lane.b32.xlu0 %v337, 32
    %v351 = vpop.permute.xlu0 %350
    %v352 = vsel %vm126, %v351, 0
    %354 = vmatprep.subr.mxu0 0.0
    %355 = vmatpush1.msra.mxu0 0.0
    %356 = vmatprep.subr.mxu0 0.0
    %357 = vmatpush1.msra.mxu0 0.0
    %358 = vmatprep.subr.mxu0 0.0
    %359 = vmatpush1.msra.mxu0 0.0
    %360 = vmatprep.subr.mxu0 0.0
    %361 = vmatpush1.msra.mxu0 0.0
    %362 = vmatprep.subr.mxu0 0.0
    %363 = vmatpush1.msra.mxu0 0.0
    %364 = vmatprep.subr.mxu0 0.0
    %365 = vmatpush1.msra.mxu0 0.0
    %366 = vmatprep.subr.mxu0 0.0
    %367 = vmatpush1.msra.mxu0 0.0
    %368 = vmatprep.subr.mxu0 0.0
    %369 = vmatpush1.msra.mxu0 0.0
    %370 = vmatprep.subr.mxu0 0.0
    %371 = vmatpush1.msra.mxu0 0.0
    %372 = vmatprep.subr.mxu0 0.0
    %373 = vmatpush1.msra.mxu0 0.0
    %374 = vmatprep.subr.mxu0 0.0
    %375 = vmatpush1.msra.mxu0 0.0
    %376 = vmatprep.subr.mxu0 0.0
    %377 = vmatpush1.msra.mxu0 0.0
    %378 = vmatprep.subr.mxu0 0.0
    %379 = vmatpush1.msra.mxu0 %v112
    %380 = vmatprep.subr.mxu0 0.0
    %381 = vmatpush1.msra.mxu0 %v111
    %382 = vmatprep.subr.mxu0 0.0
    %383 = vmatpush1.msra.mxu0 %v110
    %384 = vmatprep.subr.mxu0 0.0
    %385 = vmatpush1.msra.mxu0 %v109
    %386 = vmatprep.subr.mxu0 0.0
    %387 = vmatpush2.msra.mxu0 0.0
    %388 = vmatprep.subr.mxu0 0.0
    %389 = vmatpush2.msra.mxu0 0.0
    %390 = vmatprep.subr.mxu0 0.0
    %391 = vmatpush2.msra.mxu0 0.0
    %392 = vmatprep.subr.mxu0 0.0
    %393 = vmatpush2.msra.mxu0 0.0
    %394 = vmatprep.subr.mxu0 0.0
    %395 = vmatpush2.msra.mxu0 0.0
    %396 = vmatprep.subr.mxu0 0.0
    %397 = vmatpush2.msra.mxu0 0.0
    %398 = vmatprep.subr.mxu0 0.0
    %399 = vmatpush2.msra.mxu0 0.0
    %400 = vmatprep.subr.mxu0 0.0
    %401 = vmatpush2.msra.mxu0 0.0
    %402 = vmatprep.subr.mxu0 0.0
    %403 = vmatpush2.msra.mxu0 0.0
    %404 = vmatprep.subr.mxu0 0.0
    %405 = vmatpush2.msra.mxu0 0.0
    %406 = vmatprep.subr.mxu0 0.0
    %407 = vmatpush2.msra.mxu0 0.0
    %408 = vmatprep.subr.mxu0 0.0
    %409 = vmatpush2.msra.mxu0 0.0
    %410 = vmatprep.subr.mxu0 0.0
    %411 = vmatpush2.msra.mxu0 0.0
    %412 = vmatprep.subr.mxu0 0.0
    %413 = vmatpush2.msra.mxu0 0.0
    %414 = vmatprep.subr.mxu0 0.0
    %415 = vmatpush2.msra.mxu0 0.0
    %416 = vmatprep.subr.mxu0 0.0
    %417 = vmatpush2.msra.mxu0 0.0
    %418 = vmatprep.mubr.f32.mxu0 0.0
    %419 = vmatmul.mubr.f32.gmra.mxu0 %v352
    %v420 = vpop.f32.mrf.mxu0
    %v421 = vadd.f32 0.0, %v420
    %v422 = vpop.f32.mrf.mxu0
    %423 = vdwg.mxu0
    %v424 = vadd.f32 %v348, %v421
    %v425 = vxor.u32 %v424, 2147483648
    %v426 = vmul.f32 %v425, 1.442695
    %v427 = vpow.pop %v426
    %v428 = vadd.f32 %v427, 1.0
    %v429 = vrcp.pop %v428
    %v430 = vmul.f32 1.0, %v429
    %v431 = vmul.f32 %v430, 2.0
    %v432 = vsub.f32 %v431, 1.0
    %v433 = vmul.f32 %v430, %v331
    %435 = vrot.lane.b32.xlu0 %v432, 64
    %v436 = vpop.permute.xlu0 %435
    %v438 = vmul.f32 %v430, %v436
    %440 = vrot.lane.b32.xlu0 %v438, 32
    %v441 = vpop.permute.xlu0 %440
    %v443 = vadd.f32 %v433, %v441
    %v444 = vtanh.pop %v443
    %446 = vrot.lane.b32.xlu0 %v444, 64
    %v447 = vpop.permute.xlu0 %446
    %v449 = vmul.f32 %v430, %v447
    %s450 = sld [smem:[#allocation3 + $0x180]]
    %s451 = scalar_lea.vmem [#allocation8], %s450
    %v452 = vld [vmem:[%s451] sm:$0x1]
    %s453 = sld [smem:[#allocation3 + $0x181]]
    %s454 = scalar_lea.vmem [#allocation8], %s453
    %v455 = vld [vmem:[%s454] sm:$0x1]
    %v457 = vrot.slane %v455, 7
    %v459 = vsel %vm122, %v452, %v457
    %v460 = vsel %vm124, %v459, 0.0
    %462 = vrot.lane.b32.xlu0 %v449, 32
    %v463 = vpop.permute.xlu0 %462
    %v464 = vsel %vm126, %v463, 0
    %466 = vmatprep.subr.mxu0 0.0
    %467 = vmatpush1.msra.mxu0 0.0
    %468 = vmatprep.subr.mxu0 0.0
    %469 = vmatpush1.msra.mxu0 0.0
    %470 = vmatprep.subr.mxu0 0.0
    %471 = vmatpush1.msra.mxu0 0.0
    %472 = vmatprep.subr.mxu0 0.0
    %473 = vmatpush1.msra.mxu0 0.0
    %474 = vmatprep.subr.mxu0 0.0
    %475 = vmatpush1.msra.mxu0 0.0
    %476 = vmatprep.subr.mxu0 0.0
    %477 = vmatpush1.msra.mxu0 0.0
    %478 = vmatprep.subr.mxu0 0.0
    %479 = vmatpush1.msra.mxu0 0.0
    %480 = vmatprep.subr.mxu0 0.0
    %481 = vmatpush1.msra.mxu0 0.0
    %482 = vmatprep.subr.mxu0 0.0
    %483 = vmatpush1.msra.mxu0 0.0
    %484 = vmatprep.subr.mxu0 0.0
    %485 = vmatpush1.msra.mxu0 0.0
    %486 = vmatprep.subr.mxu0 0.0
    %487 = vmatpush1.msra.mxu0 0.0
    %488 = vmatprep.subr.mxu0 0.0
    %489 = vmatpush1.msra.mxu0 0.0
    %490 = vmatprep.subr.mxu0 0.0
    %491 = vmatpush1.msra.mxu0 %v112
    %492 = vmatprep.subr.mxu0 0.0
    %493 = vmatpush1.msra.mxu0 %v111
    %494 = vmatprep.subr.mxu0 0.0
    %495 = vmatpush1.msra.mxu0 %v110
    %496 = vmatprep.subr.mxu0 0.0
    %497 = vmatpush1.msra.mxu0 %v109
    %498 = vmatprep.subr.mxu0 0.0
    %499 = vmatpush2.msra.mxu0 0.0
    %500 = vmatprep.subr.mxu0 0.0
    %501 = vmatpush2.msra.mxu0 0.0
    %502 = vmatprep.subr.mxu0 0.0
    %503 = vmatpush2.msra.mxu0 0.0
    %504 = vmatprep.subr.mxu0 0.0
    %505 = vmatpush2.msra.mxu0 0.0
    %506 = vmatprep.subr.mxu0 0.0
    %507 = vmatpush2.msra.mxu0 0.0
    %508 = vmatprep.subr.mxu0 0.0
    %509 = vmatpush2.msra.mxu0 0.0
    %510 = vmatprep.subr.mxu0 0.0
    %511 = vmatpush2.msra.mxu0 0.0
    %512 = vmatprep.subr.mxu0 0.0
    %513 = vmatpush2.msra.mxu0 0.0
    %514 = vmatprep.subr.mxu0 0.0
    %515 = vmatpush2.msra.mxu0 0.0
    %516 = vmatprep.subr.mxu0 0.0
    %517 = vmatpush2.msra.mxu0 0.0
    %518 = vmatprep.subr.mxu0 0.0
    %519 = vmatpush2.msra.mxu0 0.0
    %520 = vmatprep.subr.mxu0 0.0
    %521 = vmatpush2.msra.mxu0 0.0
    %522 = vmatprep.subr.mxu0 0.0
    %523 = vmatpush2.msra.mxu0 0.0
    %524 = vmatprep.subr.mxu0 0.0
    %525 = vmatpush2.msra.mxu0 0.0
    %526 = vmatprep.subr.mxu0 0.0
    %527 = vmatpush2.msra.mxu0 0.0
    %528 = vmatprep.subr.mxu0 0.0
    %529 = vmatpush2.msra.mxu0 0.0
    %530 = vmatprep.mubr.f32.mxu0 0.0
    %531 = vmatmul.mubr.f32.gmra.mxu0 %v464
    %v532 = vpop.f32.mrf.mxu0
    %v533 = vadd.f32 0.0, %v532
    %v534 = vpop.f32.mrf.mxu0
    %535 = vdwg.mxu0
    %v536 = vadd.f32 %v460, %v533
    %v537 = vxor.u32 %v536, 2147483648
    %v538 = vmul.f32 %v537, 1.442695
    %v539 = vpow.pop %v538
    %v540 = vadd.f32 %v539, 1.0
    %v541 = vrcp.pop %v540
    %v542 = vmul.f32 1.0, %v541
    %v543 = vmul.f32 %v542, 2.0
    %v544 = vsub.f32 %v543, 1.0
    %v545 = vmul.f32 %v542, %v443
    %547 = vrot.lane.b32.xlu0 %v544, 64
    %v548 = vpop.permute.xlu0 %547
    %v550 = vmul.f32 %v542, %v548
    %552 = vrot.lane.b32.xlu0 %v550, 32
    %v553 = vpop.permute.xlu0 %552
    %v555 = vadd.f32 %v545, %v553
    %v556 = vtanh.pop %v555
    %558 = vrot.lane.b32.xlu0 %v556, 64
    %v559 = vpop.permute.xlu0 %558
    %v561 = vmul.f32 %v542, %v559
    %s562 = sld [smem:[#allocation3 + $0x200]]
    %s563 = scalar_lea.vmem [#allocation8], %s562
    %v564 = vld [vmem:[%s563] sm:$0x1]
    %s565 = sld [smem:[#allocation3 + $0x201]]
    %s566 = scalar_lea.vmem [#allocation8], %s565
    %v567 = vld [vmem:[%s566] sm:$0x1]
    %v569 = vrot.slane %v567, 7
    %v571 = vsel %vm122, %v564, %v569
    %v572 = vsel %vm124, %v571, 0.0
    %574 = vrot.lane.b32.xlu0 %v561, 32
    %v575 = vpop.permute.xlu0 %574
    %v576 = vsel %vm126, %v575, 0
    %578 = vmatprep.subr.mxu0 0.0
    %579 = vmatpush1.msra.mxu0 0.0
    %580 = vmatprep.subr.mxu0 0.0
    %581 = vmatpush1.msra.mxu0 0.0
    %582 = vmatprep.subr.mxu0 0.0
    %583 = vmatpush1.msra.mxu0 0.0
    %584 = vmatprep.subr.mxu0 0.0
    %585 = vmatpush1.msra.mxu0 0.0
    %586 = vmatprep.subr.mxu0 0.0
    %587 = vmatpush1.msra.mxu0 0.0
    %588 = vmatprep.subr.mxu0 0.0
    %589 = vmatpush1.msra.mxu0 0.0
    %590 = vmatprep.subr.mxu0 0.0
    %591 = vmatpush1.msra.mxu0 0.0
    %592 = vmatprep.subr.mxu0 0.0
    %593 = vmatpush1.msra.mxu0 0.0
    %594 = vmatprep.subr.mxu0 0.0
    %595 = vmatpush1.msra.mxu0 0.0
    %596 = vmatprep.subr.mxu0 0.0
    %597 = vmatpush1.msra.mxu0 0.0
    %598 = vmatprep.subr.mxu0 0.0
    %599 = vmatpush1.msra.mxu0 0.0
    %600 = vmatprep.subr.mxu0 0.0
    %601 = vmatpush1.msra.mxu0 0.0
    %602 = vmatprep.subr.mxu0 0.0
    %603 = vmatpush1.msra.mxu0 %v112
    %604 = vmatprep.subr.mxu0 0.0
    %605 = vmatpush1.msra.mxu0 %v111
    %606 = vmatprep.subr.mxu0 0.0
    %607 = vmatpush1.msra.mxu0 %v110
    %608 = vmatprep.subr.mxu0 0.0
    %609 = vmatpush1.msra.mxu0 %v109
    %610 = vmatprep.subr.mxu0 0.0
    %611 = vmatpush2.msra.mxu0 0.0
    %612 = vmatprep.subr.mxu0 0.0
    %613 = vmatpush2.msra.mxu0 0.0
    %614 = vmatprep.subr.mxu0 0.0
    %615 = vmatpush2.msra.mxu0 0.0
    %616 = vmatprep.subr.mxu0 0.0
    %617 = vmatpush2.msra.mxu0 0.0
    %618 = vmatprep.subr.mxu0 0.0
    %619 = vmatpush2.msra.mxu0 0.0
    %620 = vmatprep.subr.mxu0 0.0
    %621 = vmatpush2.msra.mxu0 0.0
    %622 = vmatprep.subr.mxu0 0.0
    %623 = vmatpush2.msra.mxu0 0.0
    %624 = vmatprep.subr.mxu0 0.0
    %625 = vmatpush2.msra.mxu0 0.0
    %626 = vmatprep.subr.mxu0 0.0
    %627 = vmatpush2.msra.mxu0 0.0
    %628 = vmatprep.subr.mxu0 0.0
    %629 = vmatpush2.msra.mxu0 0.0
    %630 = vmatprep.subr.mxu0 0.0
    %631 = vmatpush2.msra.mxu0 0.0
    %632 = vmatprep.subr.mxu0 0.0
    %633 = vmatpush2.msra.mxu0 0.0
    %634 = vmatprep.subr.mxu0 0.0
    %635 = vmatpush2.msra.mxu0 0.0
    %636 = vmatprep.subr.mxu0 0.0
    %637 = vmatpush2.msra.mxu0 0.0
    %638 = vmatprep.subr.mxu0 0.0
    %639 = vmatpush2.msra.mxu0 0.0
    %640 = vmatprep.subr.mxu0 0.0
    %641 = vmatpush2.msra.mxu0 0.0
    %642 = vmatprep.mubr.f32.mxu0 0.0
    %643 = vmatmul.mubr.f32.gmra.mxu0 %v576
    %v644 = vpop.f32.mrf.mxu0
    %v645 = vadd.f32 0.0, %v644
    %v646 = vpop.f32.mrf.mxu0
    %647 = vdwg.mxu0
    %v648 = vadd.f32 %v572, %v645
    %v649 = vxor.u32 %v648, 2147483648
    %v650 = vmul.f32 %v649, 1.442695
    %v651 = vpow.pop %v650
    %v652 = vadd.f32 %v651, 1.0
    %v653 = vrcp.pop %v652
    %v654 = vmul.f32 1.0, %v653
    %v655 = vmul.f32 %v654, 2.0
    %v656 = vsub.f32 %v655, 1.0
    %v657 = vmul.f32 %v654, %v555
    %659 = vrot.lane.b32.xlu0 %v656, 64
    %v660 = vpop.permute.xlu0 %659
    %v662 = vmul.f32 %v654, %v660
    %664 = vrot.lane.b32.xlu0 %v662, 32
    %v665 = vpop.permute.xlu0 %664
    %v667 = vadd.f32 %v657, %v665
    %v668 = vtanh.pop %v667
    %670 = vrot.lane.b32.xlu0 %v668, 64
    %v671 = vpop.permute.xlu0 %670
    %v673 = vmul.f32 %v654, %v671
    %s674 = sld [smem:[#allocation3 + $0x280]]
    %s675 = scalar_lea.vmem [#allocation8], %s674
    %v676 = vld [vmem:[%s675] sm:$0x1]
    %s677 = sld [smem:[#allocation3 + $0x281]]
    %s678 = scalar_lea.vmem [#allocation8], %s677
    %v679 = vld [vmem:[%s678] sm:$0x1]
    %v681 = vrot.slane %v679, 7
    %v683 = vsel %vm122, %v676, %v681
    %v684 = vsel %vm124, %v683, 0.0
    %686 = vrot.lane.b32.xlu0 %v673, 32
    %v687 = vpop.permute.xlu0 %686
    %v688 = vsel %vm126, %v687, 0
    %690 = vmatprep.subr.mxu0 0.0
    %691 = vmatpush1.msra.mxu0 0.0
    %692 = vmatprep.subr.mxu0 0.0
    %693 = vmatpush1.msra.mxu0 0.0
    %694 = vmatprep.subr.mxu0 0.0
    %695 = vmatpush1.msra.mxu0 0.0
    %696 = vmatprep.subr.mxu0 0.0
    %697 = vmatpush1.msra.mxu0 0.0
    %698 = vmatprep.subr.mxu0 0.0
    %699 = vmatpush1.msra.mxu0 0.0
    %700 = vmatprep.subr.mxu0 0.0
    %701 = vmatpush1.msra.mxu0 0.0
    %702 = vmatprep.subr.mxu0 0.0
    %703 = vmatpush1.msra.mxu0 0.0
    %704 = vmatprep.subr.mxu0 0.0
    %705 = vmatpush1.msra.mxu0 0.0
    %706 = vmatprep.subr.mxu0 0.0
    %707 = vmatpush1.msra.mxu0 0.0
    %708 = vmatprep.subr.mxu0 0.0
    %709 = vmatpush1.msra.mxu0 0.0
    %710 = vmatprep.subr.mxu0 0.0
    %711 = vmatpush1.msra.mxu0 0.0
    %712 = vmatprep.subr.mxu0 0.0
    %713 = vmatpush1.msra.mxu0 0.0
    %714 = vmatprep.subr.mxu0 0.0
    %715 = vmatpush1.msra.mxu0 %v112
    %716 = vmatprep.subr.mxu0 0.0
    %717 = vmatpush1.msra.mxu0 %v111
    %718 = vmatprep.subr.mxu0 0.0
    %719 = vmatpush1.msra.mxu0 %v110
    %720 = vmatprep.subr.mxu0 0.0
    %721 = vmatpush1.msra.mxu0 %v109
    %722 = vmatprep.subr.mxu0 0.0
    %723 = vmatpush2.msra.mxu0 0.0
    %724 = vmatprep.subr.mxu0 0.0
    %725 = vmatpush2.msra.mxu0 0.0
    %726 = vmatprep.subr.mxu0 0.0
    %727 = vmatpush2.msra.mxu0 0.0
    %728 = vmatprep.subr.mxu0 0.0
    %729 = vmatpush2.msra.mxu0 0.0
    %730 = vmatprep.subr.mxu0 0.0
    %731 = vmatpush2.msra.mxu0 0.0
    %732 = vmatprep.subr.mxu0 0.0
    %733 = vmatpush2.msra.mxu0 0.0
    %734 = vmatprep.subr.mxu0 0.0
    %735 = vmatpush2.msra.mxu0 0.0
    %736 = vmatprep.subr.mxu0 0.0
    %737 = vmatpush2.msra.mxu0 0.0
    %738 = vmatprep.subr.mxu0 0.0
    %739 = vmatpush2.msra.mxu0 0.0
    %740 = vmatprep.subr.mxu0 0.0
    %741 = vmatpush2.msra.mxu0 0.0
    %742 = vmatprep.subr.mxu0 0.0
    %743 = vmatpush2.msra.mxu0 0.0
    %744 = vmatprep.subr.mxu0 0.0
    %745 = vmatpush2.msra.mxu0 0.0
    %746 = vmatprep.subr.mxu0 0.0
    %747 = vmatpush2.msra.mxu0 0.0
    %748 = vmatprep.subr.mxu0 0.0
    %749 = vmatpush2.msra.mxu0 0.0
    %750 = vmatprep.subr.mxu0 0.0
    %751 = vmatpush2.msra.mxu0 0.0
    %752 = vmatprep.subr.mxu0 0.0
    %753 = vmatpush2.msra.mxu0 0.0
    %754 = vmatprep.mubr.f32.mxu0 0.0
    %755 = vmatmul.mubr.f32.gmra.mxu0 %v688
    %v756 = vpop.f32.mrf.mxu0
    %v757 = vadd.f32 0.0, %v756
    %v758 = vpop.f32.mrf.mxu0
    %759 = vdwg.mxu0
    %v760 = vadd.f32 %v684, %v757
    %v761 = vxor.u32 %v760, 2147483648
    %v762 = vmul.f32 %v761, 1.442695
    %v763 = vpow.pop %v762
    %v764 = vadd.f32 %v763, 1.0
    %v765 = vrcp.pop %v764
    %v766 = vmul.f32 1.0, %v765
    %v767 = vmul.f32 %v766, 2.0
    %v768 = vsub.f32 %v767, 1.0
    %v769 = vmul.f32 %v766, %v667
    %771 = vrot.lane.b32.xlu0 %v768, 64
    %v772 = vpop.permute.xlu0 %771
    %v774 = vmul.f32 %v766, %v772
    %776 = vrot.lane.b32.xlu0 %v774, 32
    %v777 = vpop.permute.xlu0 %776
    %v779 = vadd.f32 %v769, %v777
    %v780 = vtanh.pop %v779
    %782 = vrot.lane.b32.xlu0 %v780, 64
    %v783 = vpop.permute.xlu0 %782
    %v785 = vmul.f32 %v766, %v783
    %s786 = sld [smem:[#allocation3 + $0x300]]
    %s787 = scalar_lea.vmem [#allocation8], %s786
    %v788 = vld [vmem:[%s787] sm:$0x1]
    %s789 = sld [smem:[#allocation3 + $0x301]]
    %s790 = scalar_lea.vmem [#allocation8], %s789
    %v791 = vld [vmem:[%s790] sm:$0x1]
    %v793 = vrot.slane %v791, 7
    %v795 = vsel %vm122, %v788, %v793
    %v796 = vsel %vm124, %v795, 0.0
    %798 = vrot.lane.b32.xlu0 %v785, 32
    %v799 = vpop.permute.xlu0 %798
    %v800 = vsel %vm126, %v799, 0
    %802 = vmatprep.subr.mxu0 0.0
    %803 = vmatpush1.msra.mxu0 0.0
    %804 = vmatprep.subr.mxu0 0.0
    %805 = vmatpush1.msra.mxu0 0.0
    %806 = vmatprep.subr.mxu0 0.0
    %807 = vmatpush1.msra.mxu0 0.0
    %808 = vmatprep.subr.mxu0 0.0
    %809 = vmatpush1.msra.mxu0 0.0
    %810 = vmatprep.subr.mxu0 0.0
    %811 = vmatpush1.msra.mxu0 0.0
    %812 = vmatprep.subr.mxu0 0.0
    %813 = vmatpush1.msra.mxu0 0.0
    %814 = vmatprep.subr.mxu0 0.0
    %815 = vmatpush1.msra.mxu0 0.0
    %816 = vmatprep.subr.mxu0 0.0
    %817 = vmatpush1.msra.mxu0 0.0
    %818 = vmatprep.subr.mxu0 0.0
    %819 = vmatpush1.msra.mxu0 0.0
    %820 = vmatprep.subr.mxu0 0.0
    %821 = vmatpush1.msra.mxu0 0.0
    %822 = vmatprep.subr.mxu0 0.0
    %823 = vmatpush1.msra.mxu0 0.0
    %824 = vmatprep.subr.mxu0 0.0
    %825 = vmatpush1.msra.mxu0 0.0
    %826 = vmatprep.subr.mxu0 0.0
    %827 = vmatpush1.msra.mxu0 %v112
    %828 = vmatprep.subr.mxu0 0.0
    %829 = vmatpush1.msra.mxu0 %v111
    %830 = vmatprep.subr.mxu0 0.0
    %831 = vmatpush1.msra.mxu0 %v110
    %832 = vmatprep.subr.mxu0 0.0
    %833 = vmatpush1.msra.mxu0 %v109
    %834 = vmatprep.subr.mxu0 0.0
    %835 = vmatpush2.msra.mxu0 0.0
    %836 = vmatprep.subr.mxu0 0.0
    %837 = vmatpush2.msra.mxu0 0.0
    %838 = vmatprep.subr.mxu0 0.0
    %839 = vmatpush2.msra.mxu0 0.0
    %840 = vmatprep.subr.mxu0 0.0
    %841 = vmatpush2.msra.mxu0 0.0
    %842 = vmatprep.subr.mxu0 0.0
    %843 = vmatpush2.msra.mxu0 0.0
    %844 = vmatprep.subr.mxu0 0.0
    %845 = vmatpush2.msra.mxu0 0.0
    %846 = vmatprep.subr.mxu0 0.0
    %847 = vmatpush2.msra.mxu0 0.0
    %848 = vmatprep.subr.mxu0 0.0
    %849 = vmatpush2.msra.mxu0 0.0
    %850 = vmatprep.subr.mxu0 0.0
    %851 = vmatpush2.msra.mxu0 0.0
    %852 = vmatprep.subr.mxu0 0.0
    %853 = vmatpush2.msra.mxu0 0.0
    %854 = vmatprep.subr.mxu0 0.0
    %855 = vmatpush2.msra.mxu0 0.0
    %856 = vmatprep.subr.mxu0 0.0
    %857 = vmatpush2.msra.mxu0 0.0
    %858 = vmatprep.subr.mxu0 0.0
    %859 = vmatpush2.msra.mxu0 0.0
    %860 = vmatprep.subr.mxu0 0.0
    %861 = vmatpush2.msra.mxu0 0.0
    %862 = vmatprep.subr.mxu0 0.0
    %863 = vmatpush2.msra.mxu0 0.0
    %864 = vmatprep.subr.mxu0 0.0
    %865 = vmatpush2.msra.mxu0 0.0
    %866 = vmatprep.mubr.f32.mxu0 0.0
    %867 = vmatmul.mubr.f32.gmra.mxu0 %v800
    %v868 = vpop.f32.mrf.mxu0
    %v869 = vadd.f32 0.0, %v868
    %v870 = vpop.f32.mrf.mxu0
    %871 = vdwg.mxu0
    %v872 = vadd.f32 %v796, %v869
    %v873 = vxor.u32 %v872, 2147483648
    %v874 = vmul.f32 %v873, 1.442695
    %v875 = vpow.pop %v874
    %v876 = vadd.f32 %v875, 1.0
    %v877 = vrcp.pop %v876
    %v878 = vmul.f32 1.0, %v877
    %v879 = vmul.f32 %v878, 2.0
    %v880 = vsub.f32 %v879, 1.0
    %v881 = vmul.f32 %v878, %v779
    %883 = vrot.lane.b32.xlu0 %v880, 64
    %v884 = vpop.permute.xlu0 %883
    %v886 = vmul.f32 %v878, %v884
    %888 = vrot.lane.b32.xlu0 %v886, 32
    %v889 = vpop.permute.xlu0 %888
    %v891 = vadd.f32 %v881, %v889
    %v892 = vtanh.pop %v891
    %894 = vrot.lane.b32.xlu0 %v892, 64
    %v895 = vpop.permute.xlu0 %894
    %v897 = vmul.f32 %v878, %v895
    %s898 = sld [smem:[#allocation3 + $0x380]]
    %s899 = scalar_lea.vmem [#allocation8], %s898
    %v900 = vld [vmem:[%s899] sm:$0x1]
    %s901 = sld [smem:[#allocation3 + $0x381]]
    %s902 = scalar_lea.vmem [#allocation8], %s901
    %v903 = vld [vmem:[%s902] sm:$0x1]
    %v905 = vrot.slane %v903, 7
    %v907 = vsel %vm122, %v900, %v905
    %v908 = vsel %vm124, %v907, 0.0
    %910 = vrot.lane.b32.xlu0 %v897, 32
    %v911 = vpop.permute.xlu0 %910
    %v912 = vsel %vm126, %v911, 0
    %914 = vmatprep.subr.mxu0 0.0
    %915 = vmatpush1.msra.mxu0 0.0
    %916 = vmatprep.subr.mxu0 0.0
    %917 = vmatpush1.msra.mxu0 0.0
    %918 = vmatprep.subr.mxu0 0.0
    %919 = vmatpush1.msra.mxu0 0.0
    %920 = vmatprep.subr.mxu0 0.0
    %921 = vmatpush1.msra.mxu0 0.0
    %922 = vmatprep.subr.mxu0 0.0
    %923 = vmatpush1.msra.mxu0 0.0
    %924 = vmatprep.subr.mxu0 0.0
    %925 = vmatpush1.msra.mxu0 0.0
    %926 = vmatprep.subr.mxu0 0.0
    %927 = vmatpush1.msra.mxu0 0.0
    %928 = vmatprep.subr.mxu0 0.0
    %929 = vmatpush1.msra.mxu0 0.0
    %930 = vmatprep.subr.mxu0 0.0
    %931 = vmatpush1.msra.mxu0 0.0
    %932 = vmatprep.subr.mxu0 0.0
    %933 = vmatpush1.msra.mxu0 0.0
    %934 = vmatprep.subr.mxu0 0.0
    %935 = vmatpush1.msra.mxu0 0.0
    %936 = vmatprep.subr.mxu0 0.0
    %937 = vmatpush1.msra.mxu0 0.0
    %938 = vmatprep.subr.mxu0 0.0
    %939 = vmatpush1.msra.mxu0 %v112
    %940 = vmatprep.subr.mxu0 0.0
    %941 = vmatpush1.msra.mxu0 %v111
    %942 = vmatprep.subr.mxu0 0.0
    %943 = vmatpush1.msra.mxu0 %v110
    %944 = vmatprep.subr.mxu0 0.0
    %945 = vmatpush1.msra.mxu0 %v109
    %946 = vmatprep.subr.mxu0 0.0
    %947 = vmatpush2.msra.mxu0 0.0
    %948 = vmatprep.subr.mxu0 0.0
    %949 = vmatpush2.msra.mxu0 0.0
    %950 = vmatprep.subr.mxu0 0.0
    %951 = vmatpush2.msra.mxu0 0.0
    %952 = vmatprep.subr.mxu0 0.0
    %953 = vmatpush2.msra.mxu0 0.0
    %954 = vmatprep.subr.mxu0 0.0
    %955 = vmatpush2.msra.mxu0 0.0
    %956 = vmatprep.subr.mxu0 0.0
    %957 = vmatpush2.msra.mxu0 0.0
    %958 = vmatprep.subr.mxu0 0.0
    %959 = vmatpush2.msra.mxu0 0.0
    %960 = vmatprep.subr.mxu0 0.0
    %961 = vmatpush2.msra.mxu0 0.0
    %962 = vmatprep.subr.mxu0 0.0
    %963 = vmatpush2.msra.mxu0 0.0
    %964 = vmatprep.subr.mxu0 0.0
    %965 = vmatpush2.msra.mxu0 0.0
    %966 = vmatprep.subr.mxu0 0.0
    %967 = vmatpush2.msra.mxu0 0.0
    %968 = vmatprep.subr.mxu0 0.0
    %969 = vmatpush2.msra.mxu0 0.0
    %970 = vmatprep.subr.mxu0 0.0
    %971 = vmatpush2.msra.mxu0 0.0
    %972 = vmatprep.subr.mxu0 0.0
    %973 = vmatpush2.msra.mxu0 0.0
    %974 = vmatprep.subr.mxu0 0.0
    %975 = vmatpush2.msra.mxu0 0.0
    %976 = vmatprep.subr.mxu0 0.0
    %977 = vmatpush2.msra.mxu0 0.0
    %978 = vmatprep.mubr.f32.mxu0 0.0
    %979 = vmatmul.mubr.f32.gmra.mxu0 %v912
    %v980 = vpop.f32.mrf.mxu0
    %v981 = vadd.f32 0.0, %v980
    %v982 = vpop.f32.mrf.mxu0
    %983 = vdwg.mxu0
    %v984 = vadd.f32 %v908, %v981
    %v985 = vxor.u32 %v984, 2147483648
    %v986 = vmul.f32 %v985, 1.442695
    %v987 = vpow.pop %v986
    %v988 = vadd.f32 %v987, 1.0
    %v989 = vrcp.pop %v988
    %v990 = vmul.f32 1.0, %v989
    %v991 = vmul.f32 %v990, 2.0
    %v992 = vsub.f32 %v991, 1.0
    %v993 = vmul.f32 %v990, %v891
    %995 = vrot.lane.b32.xlu0 %v992, 64
    %v996 = vpop.permute.xlu0 %995
    %v998 = vmul.f32 %v990, %v996
    %1000 = vrot.lane.b32.xlu0 %v998, 32
    %v1001 = vpop.permute.xlu0 %1000
    %v1003 = vadd.f32 %v993, %v1001
    %v1004 = vtanh.pop %v1003
    %1006 = vrot.lane.b32.xlu0 %v1004, 64
    %v1007 = vpop.permute.xlu0 %1006
    %v1009 = vmul.f32 %v990, %v1007
    %v1010 = vld [vmem:[#allocation11] sm:$0xff]
    %v1011 = vld [vmem:[#allocation11 + $0x8] sm:$0xff]
    %v1012 = vld [vmem:[#allocation11 + $0x10] sm:$0xff]
    %v1013 = vld [vmem:[#allocation11 + $0x18] sm:$0xff]
    %s1014 = sld [smem:[#allocation6]]
    %s1015 = scalar_lea.vmem %s3, %s1014
    %v1016 = vld [vmem:[%s1015] sm:$0x1]
    %s1017 = sld [smem:[#allocation6 + $0x1]]
    %s1018 = scalar_lea.vmem %s3, %s1017
    %v1019 = vld [vmem:[%s1018] sm:$0x1]
    %v1021 = vrot.slane %v1019, 7
    %v1023 = vsel %vm122, %v1016, %v1021
    %v1024 = vsel %vm124, %v1023, 0.0
    %1026 = vrot.lane.b32.xlu0 %v1009, 32
    %v1027 = vpop.permute.xlu0 %1026
    %v1028 = vsel %vm126, %v1027, 0
    %1030 = vmatprep.subr.mxu0 0.0
    %1031 = vmatpush1.msra.mxu0 0.0
    %1032 = vmatprep.subr.mxu0 0.0
    %1033 = vmatpush1.msra.mxu0 0.0
    %1034 = vmatprep.subr.mxu0 0.0
    %1035 = vmatpush1.msra.mxu0 0.0
    %1036 = vmatprep.subr.mxu0 0.0
    %1037 = vmatpush1.msra.mxu0 0.0
    %1038 = vmatprep.subr.mxu0 0.0
    %1039 = vmatpush1.msra.mxu0 0.0
    %1040 = vmatprep.subr.mxu0 0.0
    %1041 = vmatpush1.msra.mxu0 0.0
    %1042 = vmatprep.subr.mxu0 0.0
    %1043 = vmatpush1.msra.mxu0 0.0
    %1044 = vmatprep.subr.mxu0 0.0
    %1045 = vmatpush1.msra.mxu0 0.0
    %1046 = vmatprep.subr.mxu0 0.0
    %1047 = vmatpush1.msra.mxu0 0.0
    %1048 = vmatprep.subr.mxu0 0.0
    %1049 = vmatpush1.msra.mxu0 0.0
    %1050 = vmatprep.subr.mxu0 0.0
    %1051 = vmatpush1.msra.mxu0 0.0
    %1052 = vmatprep.subr.mxu0 0.0
    %1053 = vmatpush1.msra.mxu0 0.0
    %1054 = vmatprep.subr.mxu0 0.0
    %1055 = vmatpush1.msra.mxu0 %v1013
    %1056 = vmatprep.subr.mxu0 0.0
    %1057 = vmatpush1.msra.mxu0 %v1012
    %1058 = vmatprep.subr.mxu0 0.0
    %1059 = vmatpush1.msra.mxu0 %v1011
    %1060 = vmatprep.subr.mxu0 0.0
    %1061 = vmatpush1.msra.mxu0 %v1010
    %1062 = vmatprep.subr.mxu0 0.0
    %1063 = vmatpush2.msra.mxu0 0.0
    %1064 = vmatprep.subr.mxu0 0.0
    %1065 = vmatpush2.msra.mxu0 0.0
    %1066 = vmatprep.subr.mxu0 0.0
    %1067 = vmatpush2.msra.mxu0 0.0
    %1068 = vmatprep.subr.mxu0 0.0
    %1069 = vmatpush2.msra.mxu0 0.0
    %1070 = vmatprep.subr.mxu0 0.0
    %1071 = vmatpush2.msra.mxu0 0.0
    %1072 = vmatprep.subr.mxu0 0.0
    %1073 = vmatpush2.msra.mxu0 0.0
    %1074 = vmatprep.subr.mxu0 0.0
    %1075 = vmatpush2.msra.mxu0 0.0
    %1076 = vmatprep.subr.mxu0 0.0
    %1077 = vmatpush2.msra.mxu0 0.0
    %1078 = vmatprep.subr.mxu0 0.0
    %1079 = vmatpush2.msra.mxu0 0.0
    %1080 = vmatprep.subr.mxu0 0.0
    %1081 = vmatpush2.msra.mxu0 0.0
    %1082 = vmatprep.subr.mxu0 0.0
    %1083 = vmatpush2.msra.mxu0 0.0
    %1084 = vmatprep.subr.mxu0 0.0
    %1085 = vmatpush2.msra.mxu0 0.0
    %1086 = vmatprep.subr.mxu0 0.0
    %1087 = vmatpush2.msra.mxu0 0.0
    %1088 = vmatprep.subr.mxu0 0.0
    %1089 = vmatpush2.msra.mxu0 0.0
    %1090 = vmatprep.subr.mxu0 0.0
    %1091 = vmatpush2.msra.mxu0 0.0
    %1092 = vmatprep.subr.mxu0 0.0
    %1093 = vmatpush2.msra.mxu0 0.0
    %1094 = vmatprep.mubr.f32.mxu0 0.0
    %1095 = vmatmul.mubr.f32.gmra.mxu0 %v1028
    %v1096 = vpop.f32.mrf.mxu0
    %v1097 = vadd.f32 0.0, %v1096
    %v1098 = vpop.f32.mrf.mxu0
    %1099 = vdwg.mxu0
    %v1100 = vadd.f32 %v1024, %v1097
    %v1101 = vxor.u32 %v1100, 2147483648
    %v1102 = vmul.f32 %v1101, 1.442695
    %v1103 = vpow.pop %v1102
    %v1104 = vadd.f32 %v1103, 1.0
    %v1105 = vrcp.pop %v1104
    %v1106 = vmul.f32 1.0, %v1105
    %v1107 = vmul.f32 %v1106, 2.0
    %v1108 = vsub.f32 %v1107, 1.0
    %v1109 = vmul.f32 %v1106, %v1003
    %1111 = vrot.lane.b32.xlu0 %v1108, 64
    %v1112 = vpop.permute.xlu0 %1111
    %v1114 = vmul.f32 %v1106, %v1112
    %1116 = vrot.lane.b32.xlu0 %v1114, 32
    %v1117 = vpop.permute.xlu0 %1116
    %v1119 = vadd.f32 %v1109, %v1117
    %v1120 = vtanh.pop %v1119
    %1122 = vrot.lane.b32.xlu0 %v1120, 64
    %v1123 = vpop.permute.xlu0 %1122
    %v1125 = vmul.f32 %v1106, %v1123
    %1127 = vrot.lane.b32.xlu0 %v1125, 32
    %v1128 = vpop.permute.xlu0 %1127
    %1130 = vst.msk [vmem:[#allocation2] sm:$0xff] %vm126, %v1128
    %s1131 = sld [smem:[#allocation6 + $0x80]]
    %s1132 = scalar_lea.vmem %s3, %s1131
    %v1133 = vld [vmem:[%s1132] sm:$0x1]
    %s1134 = sld [smem:[#allocation6 + $0x81]]
    %s1135 = scalar_lea.vmem %s3, %s1134
    %v1136 = vld [vmem:[%s1135] sm:$0x1]
    %v1138 = vrot.slane %v1136, 7
    %v1140 = vsel %vm122, %v1133, %v1138
    %v1141 = vsel %vm124, %v1140, 0.0
    %v1142 = vsel %vm126, %v1128, 0
    %1144 = vmatprep.subr.mxu0 0.0
    %1145 = vmatpush1.msra.mxu0 0.0
    %1146 = vmatprep.subr.mxu0 0.0
    %1147 = vmatpush1.msra.mxu0 0.0
    %1148 = vmatprep.subr.mxu0 0.0
    %1149 = vmatpush1.msra.mxu0 0.0
    %1150 = vmatprep.subr.mxu0 0.0
    %1151 = vmatpush1.msra.mxu0 0.0
    %1152 = vmatprep.subr.mxu0 0.0
    %1153 = vmatpush1.msra.mxu0 0.0
    %1154 = vmatprep.subr.mxu0 0.0
    %1155 = vmatpush1.msra.mxu0 0.0
    %1156 = vmatprep.subr.mxu0 0.0
    %1157 = vmatpush1.msra.mxu0 0.0
    %1158 = vmatprep.subr.mxu0 0.0
    %1159 = vmatpush1.msra.mxu0 0.0
    %1160 = vmatprep.subr.mxu0 0.0
    %1161 = vmatpush1.msra.mxu0 0.0
    %1162 = vmatprep.subr.mxu0 0.0
    %1163 = vmatpush1.msra.mxu0 0.0
    %1164 = vmatprep.subr.mxu0 0.0
    %1165 = vmatpush1.msra.mxu0 0.0
    %1166 = vmatprep.subr.mxu0 0.0
    %1167 = vmatpush1.msra.mxu0 0.0
    %1168 = vmatprep.subr.mxu0 0.0
    %1169 = vmatpush1.msra.mxu0 %v1013
    %1170 = vmatprep.subr.mxu0 0.0
    %1171 = vmatpush1.msra.mxu0 %v1012
    %1172 = vmatprep.subr.mxu0 0.0
    %1173 = vmatpush1.msra.mxu0 %v1011
    %1174 = vmatprep.subr.mxu0 0.0
    %1175 = vmatpush1.msra.mxu0 %v1010
    %1176 = vmatprep.subr.mxu0 0.0
    %1177 = vmatpush2.msra.mxu0 0.0
    %1178 = vmatprep.subr.mxu0 0.0
    %1179 = vmatpush2.msra.mxu0 0.0
    %1180 = vmatprep.subr.mxu0 0.0
    %1181 = vmatpush2.msra.mxu0 0.0
    %1182 = vmatprep.subr.mxu0 0.0
    %1183 = vmatpush2.msra.mxu0 0.0
    %1184 = vmatprep.subr.mxu0 0.0
    %1185 = vmatpush2.msra.mxu0 0.0
    %1186 = vmatprep.subr.mxu0 0.0
    %1187 = vmatpush2.msra.mxu0 0.0
    %1188 = vmatprep.subr.mxu0 0.0
    %1189 = vmatpush2.msra.mxu0 0.0
    %1190 = vmatprep.subr.mxu0 0.0
    %1191 = vmatpush2.msra.mxu0 0.0
    %1192 = vmatprep.subr.mxu0 0.0
    %1193 = vmatpush2.msra.mxu0 0.0
    %1194 = vmatprep.subr.mxu0 0.0
    %1195 = vmatpush2.msra.mxu0 0.0
    %1196 = vmatprep.subr.mxu0 0.0
    %1197 = vmatpush2.msra.mxu0 0.0
    %1198 = vmatprep.subr.mxu0 0.0
    %1199 = vmatpush2.msra.mxu0 0.0
    %1200 = vmatprep.subr.mxu0 0.0
    %1201 = vmatpush2.msra.mxu0 0.0
    %1202 = vmatprep.subr.mxu0 0.0
    %1203 = vmatpush2.msra.mxu0 0.0
    %1204 = vmatprep.subr.mxu0 0.0
    %1205 = vmatpush2.msra.mxu0 0.0
    %1206 = vmatprep.subr.mxu0 0.0
    %1207 = vmatpush2.msra.mxu0 0.0
    %1208 = vmatprep.mubr.f32.mxu0 0.0
    %1209 = vmatmul.mubr.f32.gmra.mxu0 %v1142
    %v1210 = vpop.f32.mrf.mxu0
    %v1211 = vadd.f32 0.0, %v1210
    %v1212 = vpop.f32.mrf.mxu0
    %1213 = vdwg.mxu0
    %v1214 = vadd.f32 %v1141, %v1211
    %v1215 = vxor.u32 %v1214, 2147483648
    %v1216 = vmul.f32 %v1215, 1.442695
    %v1217 = vpow.pop %v1216
    %v1218 = vadd.f32 %v1217, 1.0
    %v1219 = vrcp.pop %v1218
    %v1220 = vmul.f32 1.0, %v1219
    %v1221 = vmul.f32 %v1220, 2.0
    %v1222 = vsub.f32 %v1221, 1.0
    %v1223 = vmul.f32 %v1220, %v1119
    %1225 = vrot.lane.b32.xlu0 %v1222, 64
    %v1226 = vpop.permute.xlu0 %1225
    %v1228 = vmul.f32 %v1220, %v1226
    %1230 = vrot.lane.b32.xlu0 %v1228, 32
    %v1231 = vpop.permute.xlu0 %1230
    %v1233 = vadd.f32 %v1223, %v1231
    %v1234 = vtanh.pop %v1233
    %1236 = vrot.lane.b32.xlu0 %v1234, 64
    %v1237 = vpop.permute.xlu0 %1236
    %v1239 = vmul.f32 %v1220, %v1237
    %1241 = vrot.lane.b32.xlu0 %v1239, 32
    %v1242 = vpop.permute.xlu0 %1241
    %1244 = vst.msk [vmem:[#allocation2 + $0x8] sm:$0xff] %vm126, %v1242
    %s1245 = sld [smem:[#allocation6 + $0x100]]
    %s1246 = scalar_lea.vmem %s3, %s1245
    %v1247 = vld [vmem:[%s1246] sm:$0x1]
    %s1248 = sld [smem:[#allocation6 + $0x101]]
    %s1249 = scalar_lea.vmem %s3, %s1248
    %v1250 = vld [vmem:[%s1249] sm:$0x1]
    %v1252 = vrot.slane %v1250, 7
    %v1254 = vsel %vm122, %v1247, %v1252
    %v1255 = vsel %vm124, %v1254, 0.0
    %v1256 = vsel %vm126, %v1242, 0
    %1258 = vmatprep.subr.mxu0 0.0
    %1259 = vmatpush1.msra.mxu0 0.0
    %1260 = vmatprep.subr.mxu0 0.0
    %1261 = vmatpush1.msra.mxu0 0.0
    %1262 = vmatprep.subr.mxu0 0.0
    %1263 = vmatpush1.msra.mxu0 0.0
    %1264 = vmatprep.subr.mxu0 0.0
    %1265 = vmatpush1.msra.mxu0 0.0
    %1266 = vmatprep.subr.mxu0 0.0
    %1267 = vmatpush1.msra.mxu0 0.0
    %1268 = vmatprep.subr.mxu0 0.0
    %1269 = vmatpush1.msra.mxu0 0.0
    %1270 = vmatprep.subr.mxu0 0.0
    %1271 = vmatpush1.msra.mxu0 0.0
    %1272 = vmatprep.subr.mxu0 0.0
    %1273 = vmatpush1.msra.mxu0 0.0
    %1274 = vmatprep.subr.mxu0 0.0
    %1275 = vmatpush1.msra.mxu0 0.0
    %1276 = vmatprep.subr.mxu0 0.0
    %1277 = vmatpush1.msra.mxu0 0.0
    %1278 = vmatprep.subr.mxu0 0.0
    %1279 = vmatpush1.msra.mxu0 0.0
    %1280 = vmatprep.subr.mxu0 0.0
    %1281 = vmatpush1.msra.mxu0 0.0
    %1282 = vmatprep.subr.mxu0 0.0
    %1283 = vmatpush1.msra.mxu0 %v1013
    %1284 = vmatprep.subr.mxu0 0.0
    %1285 = vmatpush1.msra.mxu0 %v1012
    %1286 = vmatprep.subr.mxu0 0.0
    %1287 = vmatpush1.msra.mxu0 %v1011
    %1288 = vmatprep.subr.mxu0 0.0
    %1289 = vmatpush1.msra.mxu0 %v1010
    %1290 = vmatprep.subr.mxu0 0.0
    %1291 = vmatpush2.msra.mxu0 0.0
    %1292 = vmatprep.subr.mxu0 0.0
    %1293 = vmatpush2.msra.mxu0 0.0
    %1294 = vmatprep.subr.mxu0 0.0
    %1295 = vmatpush2.msra.mxu0 0.0
    %1296 = vmatprep.subr.mxu0 0.0
    %1297 = vmatpush2.msra.mxu0 0.0
    %1298 = vmatprep.subr.mxu0 0.0
    %1299 = vmatpush2.msra.mxu0 0.0
    %1300 = vmatprep.subr.mxu0 0.0
    %1301 = vmatpush2.msra.mxu0 0.0
    %1302 = vmatprep.subr.mxu0 0.0
    %1303 = vmatpush2.msra.mxu0 0.0
    %1304 = vmatprep.subr.mxu0 0.0
    %1305 = vmatpush2.msra.mxu0 0.0
    %1306 = vmatprep.subr.mxu0 0.0
    %1307 = vmatpush2.msra.mxu0 0.0
    %1308 = vmatprep.subr.mxu0 0.0
    %1309 = vmatpush2.msra.mxu0 0.0
    %1310 = vmatprep.subr.mxu0 0.0
    %1311 = vmatpush2.msra.mxu0 0.0
    %1312 = vmatprep.subr.mxu0 0.0
    %1313 = vmatpush2.msra.mxu0 0.0
    %1314 = vmatprep.subr.mxu0 0.0
    %1315 = vmatpush2.msra.mxu0 0.0
    %1316 = vmatprep.subr.mxu0 0.0
    %1317 = vmatpush2.msra.mxu0 0.0
    %1318 = vmatprep.subr.mxu0 0.0
    %1319 = vmatpush2.msra.mxu0 0.0
    %1320 = vmatprep.subr.mxu0 0.0
    %1321 = vmatpush2.msra.mxu0 0.0
    %1322 = vmatprep.mubr.f32.mxu0 0.0
    %1323 = vmatmul.mubr.f32.gmra.mxu0 %v1256
    %v1324 = vpop.f32.mrf.mxu0
    %v1325 = vadd.f32 0.0, %v1324
    %v1326 = vpop.f32.mrf.mxu0
    %1327 = vdwg.mxu0
    %v1328 = vadd.f32 %v1255, %v1325
    %v1329 = vxor.u32 %v1328, 2147483648
    %v1330 = vmul.f32 %v1329, 1.442695
    %v1331 = vpow.pop %v1330
    %v1332 = vadd.f32 %v1331, 1.0
    %v1333 = vrcp.pop %v1332
    %v1334 = vmul.f32 1.0, %v1333
    %v1335 = vmul.f32 %v1334, 2.0
    %v1336 = vsub.f32 %v1335, 1.0
    %v1337 = vmul.f32 %v1334, %v1233
    %1339 = vrot.lane.b32.xlu0 %v1336, 64
    %v1340 = vpop.permute.xlu0 %1339
    %v1342 = vmul.f32 %v1334, %v1340
    %1344 = vrot.lane.b32.xlu0 %v1342, 32
    %v1345 = vpop.permute.xlu0 %1344
    %v1347 = vadd.f32 %v1337, %v1345
    %v1348 = vtanh.pop %v1347
    %1350 = vrot.lane.b32.xlu0 %v1348, 64
    %v1351 = vpop.permute.xlu0 %1350
    %v1353 = vmul.f32 %v1334, %v1351
    %1355 = vrot.lane.b32.xlu0 %v1353, 32
    %v1356 = vpop.permute.xlu0 %1355
    %1358 = vst.msk [vmem:[#allocation2 + $0x10] sm:$0xff] %vm126, %v1356
    %s1359 = sld [smem:[#allocation6 + $0x180]]
    %s1360 = scalar_lea.vmem %s3, %s1359
    %v1361 = vld [vmem:[%s1360] sm:$0x1]
    %s1362 = sld [smem:[#allocation6 + $0x181]]
    %s1363 = scalar_lea.vmem %s3, %s1362
    %v1364 = vld [vmem:[%s1363] sm:$0x1]
    %v1366 = vrot.slane %v1364, 7
    %v1368 = vsel %vm122, %v1361, %v1366
    %v1369 = vsel %vm124, %v1368, 0.0
    %v1370 = vsel %vm126, %v1356, 0
    %1372 = vmatprep.subr.mxu0 0.0
    %1373 = vmatpush1.msra.mxu0 0.0
    %1374 = vmatprep.subr.mxu0 0.0
    %1375 = vmatpush1.msra.mxu0 0.0
    %1376 = vmatprep.subr.mxu0 0.0
    %1377 = vmatpush1.msra.mxu0 0.0
    %1378 = vmatprep.subr.mxu0 0.0
    %1379 = vmatpush1.msra.mxu0 0.0
    %1380 = vmatprep.subr.mxu0 0.0
    %1381 = vmatpush1.msra.mxu0 0.0
    %1382 = vmatprep.subr.mxu0 0.0
    %1383 = vmatpush1.msra.mxu0 0.0
    %1384 = vmatprep.subr.mxu0 0.0
    %1385 = vmatpush1.msra.mxu0 0.0
    %1386 = vmatprep.subr.mxu0 0.0
    %1387 = vmatpush1.msra.mxu0 0.0
    %1388 = vmatprep.subr.mxu0 0.0
    %1389 = vmatpush1.msra.mxu0 0.0
    %1390 = vmatprep.subr.mxu0 0.0
    %1391 = vmatpush1.msra.mxu0 0.0
    %1392 = vmatprep.subr.mxu0 0.0
    %1393 = vmatpush1.msra.mxu0 0.0
    %1394 = vmatprep.subr.mxu0 0.0
    %1395 = vmatpush1.msra.mxu0 0.0
    %1396 = vmatprep.subr.mxu0 0.0
    %1397 = vmatpush1.msra.mxu0 %v1013
    %1398 = vmatprep.subr.mxu0 0.0
    %1399 = vmatpush1.msra.mxu0 %v1012
    %1400 = vmatprep.subr.mxu0 0.0
    %1401 = vmatpush1.msra.mxu0 %v1011
    %1402 = vmatprep.subr.mxu0 0.0
    %1403 = vmatpush1.msra.mxu0 %v1010
    %1404 = vmatprep.subr.mxu0 0.0
    %1405 = vmatpush2.msra.mxu0 0.0
    %1406 = vmatprep.subr.mxu0 0.0
    %1407 = vmatpush2.msra.mxu0 0.0
    %1408 = vmatprep.subr.mxu0 0.0
    %1409 = vmatpush2.msra.mxu0 0.0
    %1410 = vmatprep.subr.mxu0 0.0
    %1411 = vmatpush2.msra.mxu0 0.0
    %1412 = vmatprep.subr.mxu0 0.0
    %1413 = vmatpush2.msra.mxu0 0.0
    %1414 = vmatprep.subr.mxu0 0.0
    %1415 = vmatpush2.msra.mxu0 0.0
    %1416 = vmatprep.subr.mxu0 0.0
    %1417 = vmatpush2.msra.mxu0 0.0
    %1418 = vmatprep.subr.mxu0 0.0
    %1419 = vmatpush2.msra.mxu0 0.0
    %1420 = vmatprep.subr.mxu0 0.0
    %1421 = vmatpush2.msra.mxu0 0.0
    %1422 = vmatprep.subr.mxu0 0.0
    %1423 = vmatpush2.msra.mxu0 0.0
    %1424 = vmatprep.subr.mxu0 0.0
    %1425 = vmatpush2.msra.mxu0 0.0
    %1426 = vmatprep.subr.mxu0 0.0
    %1427 = vmatpush2.msra.mxu0 0.0
    %1428 = vmatprep.subr.mxu0 0.0
    %1429 = vmatpush2.msra.mxu0 0.0
    %1430 = vmatprep.subr.mxu0 0.0
    %1431 = vmatpush2.msra.mxu0 0.0
    %1432 = vmatprep.subr.mxu0 0.0
    %1433 = vmatpush2.msra.mxu0 0.0
    %1434 = vmatprep.subr.mxu0 0.0
    %1435 = vmatpush2.msra.mxu0 0.0
    %1436 = vmatprep.mubr.f32.mxu0 0.0
    %1437 = vmatmul.mubr.f32.gmra.mxu0 %v1370
    %v1438 = vpop.f32.mrf.mxu0
    %v1439 = vadd.f32 0.0, %v1438
    %v1440 = vpop.f32.mrf.mxu0
    %1441 = vdwg.mxu0
    %v1442 = vadd.f32 %v1369, %v1439
    %v1443 = vxor.u32 %v1442, 2147483648
    %v1444 = vmul.f32 %v1443, 1.442695
    %v1445 = vpow.pop %v1444
    %v1446 = vadd.f32 %v1445, 1.0
    %v1447 = vrcp.pop %v1446
    %v1448 = vmul.f32 1.0, %v1447
    %v1449 = vmul.f32 %v1448, 2.0
    %v1450 = vsub.f32 %v1449, 1.0
    %v1451 = vmul.f32 %v1448, %v1347
    %1453 = vrot.lane.b32.xlu0 %v1450, 64
    %v1454 = vpop.permute.xlu0 %1453
    %v1456 = vmul.f32 %v1448, %v1454
    %1458 = vrot.lane.b32.xlu0 %v1456, 32
    %v1459 = vpop.permute.xlu0 %1458
    %v1461 = vadd.f32 %v1451, %v1459
    %v1462 = vtanh.pop %v1461
    %1464 = vrot.lane.b32.xlu0 %v1462, 64
    %v1465 = vpop.permute.xlu0 %1464
    %v1467 = vmul.f32 %v1448, %v1465
    %1469 = vrot.lane.b32.xlu0 %v1467, 32
    %v1470 = vpop.permute.xlu0 %1469
    %1472 = vst.msk [vmem:[#allocation2 + $0x18] sm:$0xff] %vm126, %v1470
    %s1473 = sld [smem:[#allocation6 + $0x200]]
    %s1474 = scalar_lea.vmem %s3, %s1473
    %v1475 = vld [vmem:[%s1474] sm:$0x1]
    %s1476 = sld [smem:[#allocation6 + $0x201]]
    %s1477 = scalar_lea.vmem %s3, %s1476
    %v1478 = vld [vmem:[%s1477] sm:$0x1]
    %v1480 = vrot.slane %v1478, 7
    %v1482 = vsel %vm122, %v1475, %v1480
    %v1483 = vsel %vm124, %v1482, 0.0
    %v1484 = vsel %vm126, %v1470, 0
    %1486 = vmatprep.subr.mxu0 0.0
    %1487 = vmatpush1.msra.mxu0 0.0
    %1488 = vmatprep.subr.mxu0 0.0
    %1489 = vmatpush1.msra.mxu0 0.0
    %1490 = vmatprep.subr.mxu0 0.0
    %1491 = vmatpush1.msra.mxu0 0.0
    %1492 = vmatprep.subr.mxu0 0.0
    %1493 = vmatpush1.msra.mxu0 0.0
    %1494 = vmatprep.subr.mxu0 0.0
    %1495 = vmatpush1.msra.mxu0 0.0
    %1496 = vmatprep.subr.mxu0 0.0
    %1497 = vmatpush1.msra.mxu0 0.0
    %1498 = vmatprep.subr.mxu0 0.0
    %1499 = vmatpush1.msra.mxu0 0.0
    %1500 = vmatprep.subr.mxu0 0.0
    %1501 = vmatpush1.msra.mxu0 0.0
    %1502 = vmatprep.subr.mxu0 0.0
    %1503 = vmatpush1.msra.mxu0 0.0
    %1504 = vmatprep.subr.mxu0 0.0
    %1505 = vmatpush1.msra.mxu0 0.0
    %1506 = vmatprep.subr.mxu0 0.0
    %1507 = vmatpush1.msra.mxu0 0.0
    %1508 = vmatprep.subr.mxu0 0.0
    %1509 = vmatpush1.msra.mxu0 0.0
    %1510 = vmatprep.subr.mxu0 0.0
    %1511 = vmatpush1.msra.mxu0 %v1013
    %1512 = vmatprep.subr.mxu0 0.0
    %1513 = vmatpush1.msra.mxu0 %v1012
    %1514 = vmatprep.subr.mxu0 0.0
    %1515 = vmatpush1.msra.mxu0 %v1011
    %1516 = vmatprep.subr.mxu0 0.0
    %1517 = vmatpush1.msra.mxu0 %v1010
    %1518 = vmatprep.subr.mxu0 0.0
    %1519 = vmatpush2.msra.mxu0 0.0
    %1520 = vmatprep.subr.mxu0 0.0
    %1521 = vmatpush2.msra.mxu0 0.0
    %1522 = vmatprep.subr.mxu0 0.0
    %1523 = vmatpush2.msra.mxu0 0.0
    %1524 = vmatprep.subr.mxu0 0.0
    %1525 = vmatpush2.msra.mxu0 0.0
    %1526 = vmatprep.subr.mxu0 0.0
    %1527 = vmatpush2.msra.mxu0 0.0
    %1528 = vmatprep.subr.mxu0 0.0
    %1529 = vmatpush2.msra.mxu0 0.0
    %1530 = vmatprep.subr.mxu0 0.0
    %1531 = vmatpush2.msra.mxu0 0.0
    %1532 = vmatprep.subr.mxu0 0.0
    %1533 = vmatpush2.msra.mxu0 0.0
    %1534 = vmatprep.subr.mxu0 0.0
    %1535 = vmatpush2.msra.mxu0 0.0
    %1536 = vmatprep.subr.mxu0 0.0
    %1537 = vmatpush2.msra.mxu0 0.0
    %1538 = vmatprep.subr.mxu0 0.0
    %1539 = vmatpush2.msra.mxu0 0.0
    %1540 = vmatprep.subr.mxu0 0.0
    %1541 = vmatpush2.msra.mxu0 0.0
    %1542 = vmatprep.subr.mxu0 0.0
    %1543 = vmatpush2.msra.mxu0 0.0
    %1544 = vmatprep.subr.mxu0 0.0
    %1545 = vmatpush2.msra.mxu0 0.0
    %1546 = vmatprep.subr.mxu0 0.0
    %1547 = vmatpush2.msra.mxu0 0.0
    %1548 = vmatprep.subr.mxu0 0.0
    %1549 = vmatpush2.msra.mxu0 0.0
    %1550 = vmatprep.mubr.f32.mxu0 0.0
    %1551 = vmatmul.mubr.f32.gmra.mxu0 %v1484
    %v1552 = vpop.f32.mrf.mxu0
    %v1553 = vadd.f32 0.0, %v1552
    %v1554 = vpop.f32.mrf.mxu0
    %1555 = vdwg.mxu0
    %v1556 = vadd.f32 %v1483, %v1553
    %v1557 = vxor.u32 %v1556, 2147483648
    %v1558 = vmul.f32 %v1557, 1.442695
    %v1559 = vpow.pop %v1558
    %v1560 = vadd.f32 %v1559, 1.0
    %v1561 = vrcp.pop %v1560
    %v1562 = vmul.f32 1.0, %v1561
    %v1563 = vmul.f32 %v1562, 2.0
    %v1564 = vsub.f32 %v1563, 1.0
    %v1565 = vmul.f32 %v1562, %v1461
    %1567 = vrot.lane.b32.xlu0 %v1564, 64
    %v1568 = vpop.permute.xlu0 %1567
    %v1570 = vmul.f32 %v1562, %v1568
    %1572 = vrot.lane.b32.xlu0 %v1570, 32
    %v1573 = vpop.permute.xlu0 %1572
    %v1575 = vadd.f32 %v1565, %v1573
    %v1576 = vtanh.pop %v1575
    %1578 = vrot.lane.b32.xlu0 %v1576, 64
    %v1579 = vpop.permute.xlu0 %1578
    %v1581 = vmul.f32 %v1562, %v1579
    %1583 = vrot.lane.b32.xlu0 %v1581, 32
    %v1584 = vpop.permute.xlu0 %1583
    %1586 = vst.msk [vmem:[#allocation2 + $0x20] sm:$0xff] %vm126, %v1584
    %s1587 = sld [smem:[#allocation6 + $0x280]]
    %s1588 = scalar_lea.vmem %s3, %s1587
    %v1589 = vld [vmem:[%s1588] sm:$0x1]
    %s1590 = sld [smem:[#allocation6 + $0x281]]
    %s1591 = scalar_lea.vmem %s3, %s1590
    %v1592 = vld [vmem:[%s1591] sm:$0x1]
    %v1594 = vrot.slane %v1592, 7
    %v1596 = vsel %vm122, %v1589, %v1594
    %v1597 = vsel %vm124, %v1596, 0.0
    %v1598 = vsel %vm126, %v1584, 0
    %1600 = vmatprep.subr.mxu0 0.0
    %1601 = vmatpush1.msra.mxu0 0.0
    %1602 = vmatprep.subr.mxu0 0.0
    %1603 = vmatpush1.msra.mxu0 0.0
    %1604 = vmatprep.subr.mxu0 0.0
    %1605 = vmatpush1.msra.mxu0 0.0
    %1606 = vmatprep.subr.mxu0 0.0
    %1607 = vmatpush1.msra.mxu0 0.0
    %1608 = vmatprep.subr.mxu0 0.0
    %1609 = vmatpush1.msra.mxu0 0.0
    %1610 = vmatprep.subr.mxu0 0.0
    %1611 = vmatpush1.msra.mxu0 0.0
    %1612 = vmatprep.subr.mxu0 0.0
    %1613 = vmatpush1.msra.mxu0 0.0
    %1614 = vmatprep.subr.mxu0 0.0
    %1615 = vmatpush1.msra.mxu0 0.0
    %1616 = vmatprep.subr.mxu0 0.0
    %1617 = vmatpush1.msra.mxu0 0.0
    %1618 = vmatprep.subr.mxu0 0.0
    %1619 = vmatpush1.msra.mxu0 0.0
    %1620 = vmatprep.subr.mxu0 0.0
    %1621 = vmatpush1.msra.mxu0 0.0
    %1622 = vmatprep.subr.mxu0 0.0
    %1623 = vmatpush1.msra.mxu0 0.0
    %1624 = vmatprep.subr.mxu0 0.0
    %1625 = vmatpush1.msra.mxu0 %v1013
    %1626 = vmatprep.subr.mxu0 0.0
    %1627 = vmatpush1.msra.mxu0 %v1012
    %1628 = vmatprep.subr.mxu0 0.0
    %1629 = vmatpush1.msra.mxu0 %v1011
    %1630 = vmatprep.subr.mxu0 0.0
    %1631 = vmatpush1.msra.mxu0 %v1010
    %1632 = vmatprep.subr.mxu0 0.0
    %1633 = vmatpush2.msra.mxu0 0.0
    %1634 = vmatprep.subr.mxu0 0.0
    %1635 = vmatpush2.msra.mxu0 0.0
    %1636 = vmatprep.subr.mxu0 0.0
    %1637 = vmatpush2.msra.mxu0 0.0
    %1638 = vmatprep.subr.mxu0 0.0
    %1639 = vmatpush2.msra.mxu0 0.0
    %1640 = vmatprep.subr.mxu0 0.0
    %1641 = vmatpush2.msra.mxu0 0.0
    %1642 = vmatprep.subr.mxu0 0.0
    %1643 = vmatpush2.msra.mxu0 0.0
    %1644 = vmatprep.subr.mxu0 0.0
    %1645 = vmatpush2.msra.mxu0 0.0
    %1646 = vmatprep.subr.mxu0 0.0
    %1647 = vmatpush2.msra.mxu0 0.0
    %1648 = vmatprep.subr.mxu0 0.0
    %1649 = vmatpush2.msra.mxu0 0.0
    %1650 = vmatprep.subr.mxu0 0.0
    %1651 = vmatpush2.msra.mxu0 0.0
    %1652 = vmatprep.subr.mxu0 0.0
    %1653 = vmatpush2.msra.mxu0 0.0
    %1654 = vmatprep.subr.mxu0 0.0
    %1655 = vmatpush2.msra.mxu0 0.0
    %1656 = vmatprep.subr.mxu0 0.0
    %1657 = vmatpush2.msra.mxu0 0.0
    %1658 = vmatprep.subr.mxu0 0.0
    %1659 = vmatpush2.msra.mxu0 0.0
    %1660 = vmatprep.subr.mxu0 0.0
    %1661 = vmatpush2.msra.mxu0 0.0
    %1662 = vmatprep.subr.mxu0 0.0
    %1663 = vmatpush2.msra.mxu0 0.0
    %1664 = vmatprep.mubr.f32.mxu0 0.0
    %1665 = vmatmul.mubr.f32.gmra.mxu0 %v1598
    %v1666 = vpop.f32.mrf.mxu0
    %v1667 = vadd.f32 0.0, %v1666
    %v1668 = vpop.f32.mrf.mxu0
    %1669 = vdwg.mxu0
    %v1670 = vadd.f32 %v1597, %v1667
    %v1671 = vxor.u32 %v1670, 2147483648
    %v1672 = vmul.f32 %v1671, 1.442695
    %v1673 = vpow.pop %v1672
    %v1674 = vadd.f32 %v1673, 1.0
    %v1675 = vrcp.pop %v1674
    %v1676 = vmul.f32 1.0, %v1675
    %v1677 = vmul.f32 %v1676, 2.0
    %v1678 = vsub.f32 %v1677, 1.0
    %v1679 = vmul.f32 %v1676, %v1575
    %1681 = vrot.lane.b32.xlu0 %v1678, 64
    %v1682 = vpop.permute.xlu0 %1681
    %v1684 = vmul.f32 %v1676, %v1682
    %1686 = vrot.lane.b32.xlu0 %v1684, 32
    %v1687 = vpop.permute.xlu0 %1686
    %v1689 = vadd.f32 %v1679, %v1687
    %v1690 = vtanh.pop %v1689
    %1692 = vrot.lane.b32.xlu0 %v1690, 64
    %v1693 = vpop.permute.xlu0 %1692
    %v1695 = vmul.f32 %v1676, %v1693
    %1697 = vrot.lane.b32.xlu0 %v1695, 32
    %v1698 = vpop.permute.xlu0 %1697
    %1700 = vst.msk [vmem:[#allocation2 + $0x28] sm:$0xff] %vm126, %v1698
    %v1701 = vld [vmem:[#allocation2] sm:$0xff]
    %v1702 = vld [vmem:[#allocation2 + $0x8] sm:$0xff]
    %v1703 = vld [vmem:[#allocation2 + $0x10] sm:$0xff]
    %v1704 = vld [vmem:[#allocation2 + $0x18] sm:$0xff]
    %v1705 = vld [vmem:[#allocation2 + $0x20] sm:$0xff]
    %v1706 = vld [vmem:[#allocation2 + $0x28] sm:$0xff]
    %v1707 = vld [vmem:[#allocation12] sm:$0xff]
    %v1708 = vld [vmem:[#allocation12 + $0x8] sm:$0xff]
    %v1709 = vld [vmem:[#allocation12 + $0x10] sm:$0xff]
    %v1710 = vld [vmem:[#allocation12 + $0x18] sm:$0xff]
    %v1711 = vld [vmem:[%s7] sm:$0x1]
    %v1713 = vlaneseq
    %v1714 = vshrl.u32 %v1713, 7
    %v1715 = vsub.s32 0, %v1714
    %v1716 = vrot.slane %v1711, %v1715
    %v1719 = vsel %vm126, %v1701, 0
    %v1722 = vsel %vm126, %v1702, 0
    %v1725 = vsel %vm126, %v1703, 0
    %v1728 = vsel %vm126, %v1704, 0
    %v1731 = vsel %vm126, %v1705, 0
    %v1734 = vsel %vm126, %v1706, 0
    %1736 = vmatprep.subr.mxu0 0.0
    %1737 = vmatpush1.msra.mxu0 0.0
    %1738 = vmatprep.subr.mxu0 0.0
    %1739 = vmatpush1.msra.mxu0 0.0
    %1740 = vmatprep.subr.mxu0 0.0
    %1741 = vmatpush1.msra.mxu0 0.0
    %1742 = vmatprep.subr.mxu0 0.0
    %1743 = vmatpush1.msra.mxu0 0.0
    %1744 = vmatprep.subr.mxu0 0.0
    %1745 = vmatpush1.msra.mxu0 0.0
    %1746 = vmatprep.subr.mxu0 0.0
    %1747 = vmatpush1.msra.mxu0 0.0
    %1748 = vmatprep.subr.mxu0 0.0
    %1749 = vmatpush1.msra.mxu0 0.0
    %1750 = vmatprep.subr.mxu0 0.0
    %1751 = vmatpush1.msra.mxu0 0.0
    %1752 = vmatprep.subr.mxu0 0.0
    %1753 = vmatpush1.msra.mxu0 0.0
    %1754 = vmatprep.subr.mxu0 0.0
    %1755 = vmatpush1.msra.mxu0 0.0
    %1756 = vmatprep.subr.mxu0 0.0
    %1757 = vmatpush1.msra.mxu0 0.0
    %1758 = vmatprep.subr.mxu0 0.0
    %1759 = vmatpush1.msra.mxu0 0.0
    %1760 = vmatprep.subr.mxu0 0.0
    %1761 = vmatpush1.msra.mxu0 %v1710
    %1762 = vmatprep.subr.mxu0 0.0
    %1763 = vmatpush1.msra.mxu0 %v1709
    %1764 = vmatprep.subr.mxu0 0.0
    %1765 = vmatpush1.msra.mxu0 %v1708
    %1766 = vmatprep.subr.mxu0 0.0
    %1767 = vmatpush1.msra.mxu0 %v1707
    %1768 = vmatprep.subr.mxu0 0.0
    %1769 = vmatpush2.msra.mxu0 0.0
    %1770 = vmatprep.subr.mxu0 0.0
    %1771 = vmatpush2.msra.mxu0 0.0
    %1772 = vmatprep.subr.mxu0 0.0
    %1773 = vmatpush2.msra.mxu0 0.0
    %1774 = vmatprep.subr.mxu0 0.0
    %1775 = vmatpush2.msra.mxu0 0.0
    %1776 = vmatprep.subr.mxu0 0.0
    %1777 = vmatpush2.msra.mxu0 0.0
    %1778 = vmatprep.subr.mxu0 0.0
    %1779 = vmatpush2.msra.mxu0 0.0
    %1780 = vmatprep.subr.mxu0 0.0
    %1781 = vmatpush2.msra.mxu0 0.0
    %1782 = vmatprep.subr.mxu0 0.0
    %1783 = vmatpush2.msra.mxu0 0.0
    %1784 = vmatprep.subr.mxu0 0.0
    %1785 = vmatpush2.msra.mxu0 0.0
    %1786 = vmatprep.subr.mxu0 0.0
    %1787 = vmatpush2.msra.mxu0 0.0
    %1788 = vmatprep.subr.mxu0 0.0
    %1789 = vmatpush2.msra.mxu0 0.0
    %1790 = vmatprep.subr.mxu0 0.0
    %1791 = vmatpush2.msra.mxu0 0.0
    %1792 = vmatprep.subr.mxu0 0.0
    %1793 = vmatpush2.msra.mxu0 0.0
    %1794 = vmatprep.subr.mxu0 0.0
    %1795 = vmatpush2.msra.mxu0 0.0
    %1796 = vmatprep.subr.mxu0 0.0
    %1797 = vmatpush2.msra.mxu0 0.0
    %1798 = vmatprep.subr.mxu0 0.0
    %1799 = vmatpush2.msra.mxu0 0.0
    %1800 = vmatprep.mubr.f32.mxu0 0.0
    %1801 = vmatmul.mubr.f32.gmra.mxu0 %v1719
    %v1802 = vpop.f32.mrf.mxu0
    %v1803 = vadd.f32 %v1716, %v1802
    %v1804 = vpop.f32.mrf.mxu0
    %1805 = vmatprep.mubr.f32.mxu0 0.0
    %1806 = vmatmul.mubr.f32.gmra.mxu0 %v1722
    %v1807 = vpop.f32.mrf.mxu0
    %v1808 = vadd.f32 %v1716, %v1807
    %v1809 = vpop.f32.mrf.mxu0
    %1810 = vmatprep.mubr.f32.mxu0 0.0
    %1811 = vmatmul.mubr.f32.gmra.mxu0 %v1725
    %v1812 = vpop.f32.mrf.mxu0
    %v1813 = vadd.f32 %v1716, %v1812
    %v1814 = vpop.f32.mrf.mxu0
    %1815 = vmatprep.mubr.f32.mxu0 0.0
    %1816 = vmatmul.mubr.f32.gmra.mxu0 %v1728
    %v1817 = vpop.f32.mrf.mxu0
    %v1818 = vadd.f32 %v1716, %v1817
    %v1819 = vpop.f32.mrf.mxu0
    %1820 = vmatprep.mubr.f32.mxu0 0.0
    %1821 = vmatmul.mubr.f32.gmra.mxu0 %v1731
    %v1822 = vpop.f32.mrf.mxu0
    %v1823 = vadd.f32 %v1716, %v1822
    %v1824 = vpop.f32.mrf.mxu0
    %1825 = vmatprep.mubr.f32.mxu0 0.0
    %1826 = vmatmul.mubr.f32.gmra.mxu0 %v1734
    %v1827 = vpop.f32.mrf.mxu0
    %v1828 = vadd.f32 %v1716, %v1827
    %v1829 = vpop.f32.mrf.mxu0
    %1830 = vdwg.mxu0
    %s1831 = scalar_lea.vmem %s8, 8
    %1832 = vst [vmem:[%s1831] sm:$0xff] %v1803
    %1833 = vst [vmem:[%s1831 + $0x8] sm:$0xff] %v1808
    %1834 = vst [vmem:[%s1831 + $0x10] sm:$0xff] %v1813
    %1835 = vst [vmem:[%s1831 + $0x18] sm:$0xff] %v1818
    %1836 = vst [vmem:[%s1831 + $0x20] sm:$0xff] %v1823
    %1837 = vst [vmem:[%s1831 + $0x28] sm:$0xff] %v1828
    %v1838 = vlaneseq
    %v1839 = vshrl.u32 %v1838, 7
    %v1840 = vlaneseq
    %v1841 = vand.u32 %v1840, 127
    %vm1842 = vcmp.eq.s32.totalorder %v1839, 0
    %vm1843 = vcmp.eq.s32.totalorder %v1841, 0
    %vm1844 = vmand %vm1842, %vm1843
    %v1845 = vsel %vm1844, 1.0, 0.0
    %1846 = vst [vmem:[%s8] sm:$0xff] %v1845
    %s1847 = scalar_lea.vmem %s8, 56
    %1848 = vst [vmem:[%s1847] sm:$0xff] 0.0
    // Predicated region
    $region58: #{seq2seq_forward.1} parent=1 // pred_check
      _
    $region59: #{seq2seq_forward.1} parent=1 // pred_check_branch
      %1850 = sbr.rel (0) target = $region61
    $region60: #{seq2seq_forward.1} parent=1 // pred_region
      _
    $region61: #{seq2seq_forward.1} parent=1 // pred_fallthru
      _
    // Predicated region
    $region62: #{seq2seq_forward.1} parent=1 // pred_check
      _
    $region63: #{seq2seq_forward.1} parent=1 // pred_check_branch
      %1852 = sbr.rel (0) target = $region65
    $region64: #{seq2seq_forward.1} parent=1 // pred_region
      _
    $region65: #{seq2seq_forward.1} parent=1 // pred_fallthru
      _
    %1853 = vsyncpa [#allocation4], 1
    %1854 = vsyncpa [#allocation10], 1
    %1855 = vsyncpa [#allocation13], 1
    %1856 = vsyncpa [#allocation5], 1
    %1857 = vsyncpa [#allocation7], 1

</llo_original>
